<compile_context>
chip_gen: v6e
topology: v6e:2x2x1
jax: 0.10.0
libtpu: 0.0.40
codegen_flags: <defaults>
</compile_context>

<pallas_src>
import jax
import jax.numpy as jnp
from jax import lax
from jax.experimental import pallas as pl
from jax.experimental.pallas import tpu as pltpu


def _round_up(x: int, m: int) -> int:
    return (x + m - 1) // m * m


_MIB = 1024 * 1024
_N_CHUNK = 512        # table rows contracted per one-hot chunk (fused path)
_MAX_TB = 128         # batch tile for the fused path (>=2 grid steps once bp>=256)
_HBM_DMA_DEPTH = 8    # in-flight row DMAs per table on the HBM gather path


def _vmem_capacity_bytes() -> int:
    try:
        cap = getattr(pltpu.get_tpu_info(), "vmem_capacity_bytes", None)
        if cap:
            return int(cap)
    except Exception:
        pass
    return 64 * _MIB  # conservative v7x floor


def _padded_rows(n: int) -> int:
    # Tables above one chunk are padded (once, at init) to a chunk multiple so
    # in-kernel pl.ds slicing never reads out of bounds.
    return n if n <= _N_CHUNK else _round_up(n, _N_CHUNK)


def _pad_table_rows(table, n_pad: int):
    n, d = table.shape
    if n_pad == n:
        return table
    return jnp.concatenate([table, jnp.zeros((n_pad - n, d), table.dtype)], axis=0)


def _fused_vmem_plan_bytes(ne_pad, nr_pad, d, itemsize, tb, single_buffer_tables):
    """Actual VMEM footprint of the fused path (tables + I/O + one-hot temps)."""
    table_bufs = 1 if single_buffer_tables else 2
    tables = table_bufs * (ne_pad + nr_pad) * d * itemsize
    outs = 2 * 2 * tb * d * itemsize                      # two outputs, double-buffered
    idxs = 2 * 2 * tb * 128 * 4                           # (tb,1) idx blocks pad to a lane tile
    onehot = 4 * tb * min(_N_CHUNK, max(ne_pad, nr_pad)) * 4   # live one-hot chunks + MXU staging
    return tables + outs + idxs + onehot + 2 * _MIB       # + margin for Mosaic scratch


# -----------------------------------------------------------------------------
# Path 1: fused one-hot MXU gather (tables resident in VMEM, N-tiled one-hot).
# -----------------------------------------------------------------------------
def _make_fused_kernel(tb, ne_true, nr_true, precision, chunk):
    def gather(ids, table_ref, out_ref):
        # ids: (tb, 1) int32; table_ref: (n, d) VMEM; out_ref: (tb, d) VMEM.
        n = table_ref.shape[0]
        if n <= chunk:
            onehot = (lax.broadcasted_iota(jnp.int32, (tb, n), 1) == ids
                      ).astype(table_ref.dtype)
            out_ref[...] = jnp.dot(onehot, table_ref[...],
                                   preferred_element_type=jnp.float32,
                                   precision=precision).astype(out_ref.dtype)
        else:
            # N-tiled contraction: keep the live one-hot slab at (tb, chunk).
            # Each output row is produced by exactly one chunk (one-hot), so
            # accumulating in the output dtype is exact.
            n_chunks = n // chunk          # exact: table padded at init
            out_ref[...] = jnp.zeros_like(out_ref)

            def body(c, carry):
                base = pl.multiple_of(c * chunk, chunk)
                pos = lax.broadcasted_iota(jnp.int32, (tb, chunk), 1) + base
                onehot = (pos == ids).astype(table_ref.dtype)
                out_ref[...] += jnp.dot(onehot, table_ref[pl.ds(base, chunk), :],
                                        preferred_element_type=jnp.float32,
                                        precision=precision).astype(out_ref.dtype)
                return carry

            lax.fori_loop(0, n_chunks, body, 0)

    def kernel(h_idx_ref, r_idx_ref, ent_ref, rel_ref, h_out_ref, r_out_ref):
        # In-kernel clamp (free on the VPU) replaces the per-call host-side clip.
        h_ids = jnp.clip(h_idx_ref[...], 0, ne_true - 1)
        r_ids = jnp.clip(r_idx_ref[...], 0, nr_true - 1)
        gather(h_ids, ent_ref, h_out_ref)
        gather(r_ids, rel_ref, r_out_ref)

    return kernel


def fused_embedding_lookup(ent_table, rel_table, heads, relations,
                           num_entities=None, num_relations=None,
                           single_buffer_tables=True, vmem_limit_bytes=None):
    """Both lookups in a single pallas_call (one-hot MXU gather, VMEM tables)."""
    ne_pad, d = ent_table.shape
    nr_pad, d2 = rel_table.shape
    assert d == d2, "embedding_dim mismatch between tables"
    ne = num_entities if num_entities is not None else ne_pad
    nr = num_relations if num_relations is not None else nr_pad
    b = heads.shape[0]
    assert relations.shape[0] == b

    h = heads.astype(jnp.int32)
    r = relations.astype(jnp.int32)

    # Batch tiling: sublane-aligned, capped at 128 so bp >= 256 gives >= 2 grid
    # steps (both v7x TensorCores) and the one-hot/vreg pressure stays low.
    bp0 = _round_up(max(b, 1), 8)
    tb = min(bp0, _MAX_TB)
    bp = _round_up(max(b, 1), tb)
    if bp != b:
        pad = jnp.zeros((bp - b,), jnp.int32)
        h = jnp.concatenate([h, pad])
        r = jnp.concatenate([r, pad])
    h2 = h.reshape(bp, 1)
    r2 = r.reshape(bp, 1)

    itemsize = jnp.dtype(ent_table.dtype).itemsize
    # f32 tables need HIGHEST for an exact gather; bf16 tables are exact in one
    # MXU pass at DEFAULT (1.0 * x), which is the cheap option on v5e.
    precision = (lax.Precision.HIGHEST if itemsize >= 4 else lax.Precision.DEFAULT)
    kernel = _make_fused_kernel(tb, ne, nr, precision, _N_CHUNK)

    if vmem_limit_bytes is None:
        cap = _vmem_capacity_bytes()
        plan = _fused_vmem_plan_bytes(ne_pad, nr_pad, d, itemsize, tb,
                                      single_buffer_tables)
        vmem_limit_bytes = int(min(max(plan + 8 * _MIB, 32 * _MIB), cap - 2 * _MIB))

    cost = pl.CostEstimate(
        flops=2 * bp * d * (ne_pad + nr_pad),
        transcendentals=0,
        bytes_accessed=(ne_pad * d + nr_pad * d + 2 * bp * d) * itemsize + 2 * bp * 4,
    )

    # Grid-invariant tables: single-buffer them (their index_map is constant).
    table_kw = {"pipeline_mode": pl.Buffered(1)} if single_buffer_tables else {}

    head_out, rel_out = pl.pallas_call(
        kernel,
        out_shape=(jax.ShapeDtypeStruct((bp, d), ent_table.dtype),
                   jax.ShapeDtypeStruct((bp, d), rel_table.dtype)),
        grid_spec=pltpu.PrefetchScalarGridSpec(
            num_scalar_prefetch=0,
            grid=(bp // tb,),
            in_specs=[
                pl.BlockSpec((tb, 1), lambda bi: (bi, 0)),               # head idx
                pl.BlockSpec((tb, 1), lambda bi: (bi, 0)),               # rel  idx
                pl.BlockSpec((ne_pad, d), lambda bi: (0, 0), **table_kw),  # entity tbl
                pl.BlockSpec((nr_pad, d), lambda bi: (0, 0), **table_kw),  # relation tbl
            ],
            out_specs=[
                pl.BlockSpec((tb, d), lambda bi: (bi, 0)),
                pl.BlockSpec((tb, d), lambda bi: (bi, 0)),
            ],
        ),
        compiler_params=pltpu.CompilerParams(
            dimension_semantics=("parallel",),          # v7x: shard over both TCs
            vmem_limit_bytes=int(vmem_limit_bytes)),
        cost_estimate=cost,
    )(h2, r2, ent_table, rel_table)

    return head_out[:b], rel_out[:b]


# -----------------------------------------------------------------------------
# Path 2: both tables stay in HBM; fused dual gather with deep DMA concurrency.
# -----------------------------------------------------------------------------
def _make_hbm_dual_kernel(tb, depth):
    def kernel(h_idx_ref, r_idx_ref, ent_hbm, rel_hbm, h_out, r_out, sems):
        # h_idx_ref/r_idx_ref : SMEM (bp,) int32 (scalar-prefetched)
        # ent_hbm/rel_hbm     : HBM (N, D) (memory_space=pl.ANY, no auto-DMA)
        # h_out/r_out         : VMEM (tb, D)
        # sems                : DMA semaphores (2, depth)
        ne = ent_hbm.shape[0]
        nr = rel_hbm.shape[0]
        base = pl.program_id(0) * tb

        def h_copy(i, slot):
            row = jnp.clip(h_idx_ref[base + i], 0, ne - 1)
            return pltpu.make_async_copy(ent_hbm.at[pl.ds(row, 1), :],
                                         h_out.at[pl.ds(i, 1), :],
                                         sems.at[0, slot])

        def r_copy(i, slot):
            row = jnp.clip(r_idx_ref[base + i], 0, nr - 1)
            return pltpu.make_async_copy(rel_hbm.at[pl.ds(row, 1), :],
                                         r_out.at[pl.ds(i, 1), :],
                                         sems.at[1, slot])

        # Prime a deep wave: `depth` rows per table in flight before any wait.
        for i in range(min(depth, tb)):          # static Python loop (depth small)
            h_copy(i, i).start()
            r_copy(i, i).start()

        def body(i, carry):
            slot = lax.rem(i, depth)

            @pl.when(i + depth < tb)             # keep `depth` rows in flight
            def _():
                h_copy(i + depth, slot).start()
                r_copy(i + depth, slot).start()

            h_copy(i, slot).wait()
            r_copy(i, slot).wait()
            return carry

        lax.fori_loop(0, tb, body, 0)

    return kernel


def dual_embedding_lookup_hbm(ent_table, rel_table, heads, relations):
    """Fused row gather that never loads the full tables: HBM traffic = B*D rows."""
    ne, d = ent_table.shape
    nr, d2 = rel_table.shape
    assert d == d2, "embedding_dim mismatch between tables"
    b = heads.shape[0]
    assert relations.shape[0] == b

    h = heads.astype(jnp.int32)
    r = relations.astype(jnp.int32)

    bp0 = _round_up(max(b, 1), 8)
    if bp0 >= 256:                                  # >= 2 grid steps -> both v7x TCs
        tb = min(_round_up(pl.cdiv(bp0, 2), 8), 256)
    else:
        tb = bp0
    bp = _round_up(max(b, 1), tb)
    if bp != b:
        pad = jnp.zeros((bp - b,), jnp.int32)
        h = jnp.concatenate([h, pad])
        r = jnp.concatenate([r, pad])

    depth = min(_HBM_DMA_DEPTH, tb)
    kernel = _make_hbm_dual_kernel(tb, depth)

    itemsize = jnp.dtype(ent_table.dtype).itemsize
    cost = pl.CostEstimate(flops=0, transcendentals=0,
                           bytes_accessed=4 * bp * d * itemsize + 2 * bp * 4)

    h_out, r_out = pl.pallas_call(
        kernel,
        out_shape=(jax.ShapeDtypeStruct((bp, d), ent_table.dtype),
                   jax.ShapeDtypeStruct((bp, d), rel_table.dtype)),
        grid_spec=pltpu.PrefetchScalarGridSpec(
            num_scalar_prefetch=2,                       # both index vectors -> SMEM
            grid=(bp // tb,),
            in_specs=[pl.BlockSpec(memory_space=pl.ANY),     # tables stay in HBM
                      pl.BlockSpec(memory_space=pl.ANY)],
            out_specs=[pl.BlockSpec((tb, d), lambda g, hi, ri: (g, 0)),
                       pl.BlockSpec((tb, d), lambda g, hi, ri: (g, 0))],
            scratch_shapes=[pltpu.SemaphoreType.DMA((2, depth))],
        ),
        compiler_params=pltpu.CompilerParams(
            dimension_semantics=("parallel",)),
        cost_estimate=cost,
    )(h, r, ent_table, rel_table)

    return h_out[:b], r_out[:b]


# -----------------------------------------------------------------------------
# Module port.
# -----------------------------------------------------------------------------
class EmbeddingGenerator:
    """JAX/Pallas port of the PyTorch EmbeddingGenerator module."""

    def __init__(self, num_entities, num_relations, embedding_dim, key,
                 dtype=jnp.float32):
        # dtype=jnp.bfloat16 halves HBM/VMEM bytes and makes the one-hot gather
        # a single exact MXU pass (recommended on v5e); float32 matches nn.Embedding.
        k_ent, k_rel = jax.random.split(key)
        # nn.Embedding default init: N(0, 1)
        self.entity_embeddings = jax.random.normal(
            k_ent, (num_entities, embedding_dim), jnp.float32).astype(dtype)
        self.relation_embeddings = jax.random.normal(
            k_rel, (num_relations, embedding_dim), jnp.float32).astype(dtype)
        self.num_entities = num_entities
        self.num_relations = num_relations

        itemsize = jnp.dtype(dtype).itemsize
        ne_pad = _padded_rows(num_entities)
        nr_pad = _padded_rows(num_relations)
        cap = _vmem_capacity_bytes()
        fused_cap = min(cap - 16 * _MIB, 100 * _MIB)   # v7x: ~48 MiB; v5e/v6e: 100 MiB
        plan = _fused_vmem_plan_bytes(ne_pad, nr_pad, embedding_dim, itemsize,
                                      _MAX_TB, single_buffer_tables=True)
        self._use_fused = plan <= fused_cap
        self._single_buffer_tables = True
        if self._use_fused:
            # Pad table rows once at init to a chunk multiple (never per call).
            self._ent_fused = _pad_table_rows(self.entity_embeddings, ne_pad)
            self._rel_fused = _pad_table_rows(self.relation_embeddings, nr_pad)

    def _fused(self, heads, relations):
        return fused_embedding_lookup(
            self._ent_fused, self._rel_fused, heads, relations,
            num_entities=self.num_entities, num_relations=self.num_relations,
            single_buffer_tables=self._single_buffer_tables)

    def __call__(self, heads, relations):
        if self._use_fused:
            if self._single_buffer_tables:
                try:
                    return self._fused(heads, relations)
                except Exception:
                    # TODO(synk): drop this fallback once pl.Buffered(1) is
                    # guaranteed on every deployed jaxlib.
                    self._single_buffer_tables = False
            return self._fused(heads, relations)
        # Large tables: keep them in HBM, gather only the needed rows (fused call).
        return dual_embedding_lookup_hbm(
            self.entity_embeddings, self.relation_embeddings, heads, relations)


if __name__ == "__main__":
    key = jax.random.PRNGKey(0)
    k_model, k_heads, k_rels, k_model2, k_heads2 = jax.random.split(key, 5)

    num_entities = 16
    num_relations = 8
    embedding_dim = 128
    batch = 8

    model = EmbeddingGenerator(num_entities, num_relations, embedding_dim, k_model)
    heads = jax.random.randint(k_heads, (batch,), 0, num_entities, dtype=jnp.int32)
    rels = jax.random.randint(k_rels, (batch,), 0, num_relations, dtype=jnp.int32)

    # Forward pass (fused one-hot MXU path at these table sizes).
    head_emb, rel_emb = model(heads, rels)
    head_emb = jax.block_until_ready(head_emb)
    rel_emb = jax.block_until_ready(rel_emb)

    ref_head = jnp.take(model.entity_embeddings, heads, axis=0)
    ref_rel = jnp.take(model.relation_embeddings, rels, axis=0)
    assert head_emb.shape == (batch, embedding_dim)
    assert rel_emb.shape == (batch, embedding_dim)
    assert jnp.allclose(head_emb, ref_head, rtol=1e-4, atol=1e-5)
    assert jnp.allclose(rel_emb, ref_rel, rtol=1e-4, atol=1e-5)

    # Exercise the N-tiled (chunked) fused path: entity table > one chunk.
    model2 = EmbeddingGenerator(1100, num_relations, embedding_dim, k_model2)
    heads2 = jax.random.randint(k_heads2, (batch,), 0, 1100, dtype=jnp.int32)
    h2, r2 = model2(heads2, rels)
    h2 = jax.block_until_ready(h2)
    r2 = jax.block_until_ready(r2)
    assert jnp.allclose(h2, jnp.take(model2.entity_embeddings, heads2, axis=0),
                        rtol=1e-4, atol=1e-5)
    assert jnp.allclose(r2, jnp.take(model2.relation_embeddings, rels, axis=0),
                        rtol=1e-4, atol=1e-5)

    # Also exercise the fused large-table (HBM dual row-gather) path on the same data.
    hbm_head, hbm_rel = dual_embedding_lookup_hbm(
        model.entity_embeddings, model.relation_embeddings, heads, rels)
    hbm_head = jax.block_until_ready(hbm_head)
    hbm_rel = jax.block_until_ready(hbm_rel)
    assert jnp.allclose(hbm_head, ref_head)
    assert jnp.allclose(hbm_rel, ref_rel)

    print("KERNEL_OK")
</pallas_src>

<mosaic_0001>
module attributes {stable_mosaic.version = 11 : i64} {
  func.func @kernel(%arg0: i32, %arg1: memref<8x1xi32, #tpu.memory_space<vmem>>, %arg2: memref<8x1xi32, #tpu.memory_space<vmem>>, %arg3: memref<16x128xf32, #tpu.memory_space<vmem>>, %arg4: memref<8x128xf32, #tpu.memory_space<vmem>>, %arg5: memref<8x128xf32, #tpu.memory_space<vmem>>, %arg6: memref<8x128xf32, #tpu.memory_space<vmem>>) attributes {dimension_semantics = [#tpu.dimension_semantics<parallel>], iteration_bounds = array<i64: 1>, scalar_prefetch = 0 : i64, scratch_operands = 0 : i64, tpu.core_type = #tpu.core_type<tc>, window_params = [{transform_indices = @transform_0, window_bounds = array<i64: 8, 1>}, {transform_indices = @transform_1, window_bounds = array<i64: 8, 1>}, {pipeline_mode = #tpu.pipeline_mode<synchronous>, transform_indices = @transform_2, window_bounds = array<i64: 16, 128>}, {pipeline_mode = #tpu.pipeline_mode<synchronous>, transform_indices = @transform_3, window_bounds = array<i64: 8, 128>}, {transform_indices = @transform_4, window_bounds = array<i64: 8, 128>}, {transform_indices = @transform_5, window_bounds = array<i64: 8, 128>}]} {
    %c0 = arith.constant 0 : index
    %c0_0 = arith.constant 0 : index
    %0 = vector.load %arg1[%c0, %c0_0] : memref<8x1xi32, #tpu.memory_space<vmem>>, vector<8x1xi32>
    %c0_i32 = arith.constant 0 : i32
    %c15_i32 = arith.constant 15 : i32
    %1 = vector.broadcast %c0_i32 : i32 to vector<8x1xi32>
    %2 = arith.maxsi %1, %0 : vector<8x1xi32>
    %3 = vector.broadcast %c15_i32 : i32 to vector<8x1xi32>
    %4 = arith.minsi %3, %2 : vector<8x1xi32>
    %c0_1 = arith.constant 0 : index
    %c0_2 = arith.constant 0 : index
    %5 = vector.load %arg2[%c0_1, %c0_2] : memref<8x1xi32, #tpu.memory_space<vmem>>, vector<8x1xi32>
    %c0_i32_3 = arith.constant 0 : i32
    %c7_i32 = arith.constant 7 : i32
    %6 = vector.broadcast %c0_i32_3 : i32 to vector<8x1xi32>
    %7 = arith.maxsi %6, %5 : vector<8x1xi32>
    %8 = vector.broadcast %c7_i32 : i32 to vector<8x1xi32>
    %9 = arith.minsi %8, %7 : vector<8x1xi32>
    %10 = tpu.iota {dimensions = array<i32: 1>} : vector<8x16xi32>
    %11 = vector.broadcast %4 : vector<8x1xi32> to vector<8x16xi32>
    %12 = arith.cmpi eq, %10, %11 : vector<8x16xi32>
    %13 = arith.extui %12 : vector<8x16xi1> to vector<8x16xi32>
    %14 = arith.sitofp %13 : vector<8x16xi32> to vector<8x16xf32>
    %c0_4 = arith.constant 0 : index
    %c0_5 = arith.constant 0 : index
    %15 = vector.load %arg3[%c0_4, %c0_5] : memref<16x128xf32, #tpu.memory_space<vmem>>, vector<16x128xf32>
    %cst = arith.constant dense<0.000000e+00> : vector<8x128xf32>
    %16 = tpu.matmul %14, %15, %cst {dimension_numbers = #tpu.dot_dimension_numbers<[1], [0], [0], [1], [0, 0, 1, 1], [], []>, precision = #tpu.contract_precision<fp32>} : vector<8x16xf32>, vector<16x128xf32>, vector<8x128xf32> -> vector<8x128xf32>
    %c0_6 = arith.constant 0 : index
    %c0_7 = arith.constant 0 : index
    %17 = vector.load %arg5[%c0_6, %c0_7] : memref<8x128xf32, #tpu.memory_space<vmem>>, vector<8x128xf32>
    tpu.vector_store %arg5[%c0_6, %c0_7], %16 {strides = array<i32>} : memref<8x128xf32, #tpu.memory_space<vmem>>, vector<8x128xf32>,
    %18 = tpu.iota {dimensions = array<i32: 1>} : vector<8x8xi32>
    %19 = vector.broadcast %9 : vector<8x1xi32> to vector<8x8xi32>
    %20 = arith.cmpi eq, %18, %19 : vector<8x8xi32>
    %21 = arith.extui %20 : vector<8x8xi1> to vector<8x8xi32>
    %22 = arith.sitofp %21 : vector<8x8xi32> to vector<8x8xf32>
    %c0_8 = arith.constant 0 : index
    %c0_9 = arith.constant 0 : index
    %23 = vector.load %arg4[%c0_8, %c0_9] : memref<8x128xf32, #tpu.memory_space<vmem>>, vector<8x128xf32>
    %cst_10 = arith.constant dense<0.000000e+00> : vector<8x128xf32>
    %24 = tpu.matmul %22, %23, %cst_10 {dimension_numbers = #tpu.dot_dimension_numbers<[1], [0], [0], [1], [0, 0, 1, 1], [], []>, precision = #tpu.contract_precision<fp32>} : vector<8x8xf32>, vector<8x128xf32>, vector<8x128xf32> -> vector<8x128xf32>
    %c0_11 = arith.constant 0 : index
    %c0_12 = arith.constant 0 : index
    %25 = vector.load %arg6[%c0_11, %c0_12] : memref<8x128xf32, #tpu.memory_space<vmem>>, vector<8x128xf32>
    tpu.vector_store %arg6[%c0_11, %c0_12], %24 {strides = array<i32>} : memref<8x128xf32, #tpu.memory_space<vmem>>, vector<8x128xf32>,
    return
  }
  func.func @transform_0(%arg0: i32) -> (i32, i32) {
    %c0_i32 = arith.constant 0 : i32
    %c0_i32_0 = arith.constant 0 : i32
    return %arg0, %c0_i32 : i32, i32
  }
  func.func @transform_1(%arg0: i32) -> (i32, i32) {
    %c0_i32 = arith.constant 0 : i32
    %c0_i32_0 = arith.constant 0 : i32
    return %arg0, %c0_i32 : i32, i32
  }
  func.func @transform_2(%arg0: i32) -> (i32, i32) {
    %c0_i32 = arith.constant 0 : i32
    %c0_i32_0 = arith.constant 0 : i32
    %c0_i32_1 = arith.constant 0 : i32
    return %c0_i32, %c0_i32_0 : i32, i32
  }
  func.func @transform_3(%arg0: i32) -> (i32, i32) {
    %c0_i32 = arith.constant 0 : i32
    %c0_i32_0 = arith.constant 0 : i32
    %c0_i32_1 = arith.constant 0 : i32
    return %c0_i32, %c0_i32_0 : i32, i32
  }
  func.func @transform_4(%arg0: i32) -> (i32, i32) {
    %c0_i32 = arith.constant 0 : i32
    %c0_i32_0 = arith.constant 0 : i32
    return %arg0, %c0_i32 : i32, i32
  }
  func.func @transform_5(%arg0: i32) -> (i32, i32) {
    %c0_i32 = arith.constant 0 : i32
    %c0_i32_0 = arith.constant 0 : i32
    return %arg0, %c0_i32 : i32, i32
  }
}

module attributes {stable_mosaic.version = 11 : i64} {
  func.func @kernel(%arg0: i32, %arg1: memref<8x1xi32, #tpu.memory_space<vmem>>, %arg2: memref<8x1xi32, #tpu.memory_space<vmem>>, %arg3: memref<16x128xf32, #tpu.memory_space<vmem>>, %arg4: memref<8x128xf32, #tpu.memory_space<vmem>>, %arg5: memref<8x128xf32, #tpu.memory_space<vmem>>, %arg6: memref<8x128xf32, #tpu.memory_space<vmem>>) attributes {dimension_semantics = [#tpu.dimension_semantics<parallel>], iteration_bounds = array<i64: 1>, scalar_prefetch = 0 : i64, scratch_operands = 0 : i64, tpu.core_type = #tpu.core_type<tc>, window_params = [{transform_indices = @transform_0, window_bounds = array<i64: 8, 1>}, {transform_indices = @transform_1, window_bounds = array<i64: 8, 1>}, {pipeline_mode = #tpu.pipeline_mode<synchronous>, transform_indices = @transform_2, window_bounds = array<i64: 16, 128>}, {pipeline_mode = #tpu.pipeline_mode<synchronous>, transform_indices = @transform_3, window_bounds = array<i64: 8, 128>}, {transform_indices = @transform_4, window_bounds = array<i64: 8, 128>}, {transform_indices = @transform_5, window_bounds = array<i64: 8, 128>}]} {
    %c0 = arith.constant 0 : index
    %c0_0 = arith.constant 0 : index
    %0 = vector.load %arg1[%c0, %c0_0] : memref<8x1xi32, #tpu.memory_space<vmem>>, vector<8x1xi32>
    %c0_i32 = arith.constant 0 : i32
    %c15_i32 = arith.constant 15 : i32
    %1 = vector.broadcast %c0_i32 : i32 to vector<8x1xi32>
    %2 = arith.maxsi %1, %0 : vector<8x1xi32>
    %3 = vector.broadcast %c15_i32 : i32 to vector<8x1xi32>
    %4 = arith.minsi %3, %2 : vector<8x1xi32>
    %c0_1 = arith.constant 0 : index
    %c0_2 = arith.constant 0 : index
    %5 = vector.load %arg2[%c0_1, %c0_2] : memref<8x1xi32, #tpu.memory_space<vmem>>, vector<8x1xi32>
    %c0_i32_3 = arith.constant 0 : i32
    %c7_i32 = arith.constant 7 : i32
    %6 = vector.broadcast %c0_i32_3 : i32 to vector<8x1xi32>
    %7 = arith.maxsi %6, %5 : vector<8x1xi32>
    %8 = vector.broadcast %c7_i32 : i32 to vector<8x1xi32>
    %9 = arith.minsi %8, %7 : vector<8x1xi32>
    %10 = tpu.iota {dimensions = array<i32: 1>} : vector<8x16xi32>
    %11 = vector.broadcast %4 : vector<8x1xi32> to vector<8x16xi32>
    %12 = arith.cmpi eq, %10, %11 : vector<8x16xi32>
    %13 = arith.extui %12 : vector<8x16xi1> to vector<8x16xi32>
    %14 = arith.sitofp %13 : vector<8x16xi32> to vector<8x16xf32>
    %c0_4 = arith.constant 0 : index
    %c0_5 = arith.constant 0 : index
    %15 = vector.load %arg3[%c0_4, %c0_5] : memref<16x128xf32, #tpu.memory_space<vmem>>, vector<16x128xf32>
    %cst = arith.constant dense<0.000000e+00> : vector<8x128xf32>
    %16 = tpu.matmul %14, %15, %cst {dimension_numbers = #tpu.dot_dimension_numbers<[1], [0], [0], [1], [0, 0, 1, 1], [], []>, precision = #tpu.contract_precision<fp32>} : vector<8x16xf32>, vector<16x128xf32>, vector<8x128xf32> -> vector<8x128xf32>
    %c0_6 = arith.constant 0 : index
    %c0_7 = arith.constant 0 : index
    %17 = vector.load %arg5[%c0_6, %c0_7] : memref<8x128xf32, #tpu.memory_space<vmem>>, vector<8x128xf32>
    tpu.vector_store %arg5[%c0_6, %c0_7], %16 {strides = array<i32>} : memref<8x128xf32, #tpu.memory_space<vmem>>, vector<8x128xf32>,
    %18 = tpu.iota {dimensions = array<i32: 1>} : vector<8x8xi32>
    %19 = vector.broadcast %9 : vector<8x1xi32> to vector<8x8xi32>
    %20 = arith.cmpi eq, %18, %19 : vector<8x8xi32>
    %21 = arith.extui %20 : vector<8x8xi1> to vector<8x8xi32>
    %22 = arith.sitofp %21 : vector<8x8xi32> to vector<8x8xf32>
    %c0_8 = arith.constant 0 : index
    %c0_9 = arith.constant 0 : index
    %23 = vector.load %arg4[%c0_8, %c0_9] : memref<8x128xf32, #tpu.memory_space<vmem>>, vector<8x128xf32>
    %cst_10 = arith.constant dense<0.000000e+00> : vector<8x128xf32>
    %24 = tpu.matmul %22, %23, %cst_10 {dimension_numbers = #tpu.dot_dimension_numbers<[1], [0], [0], [1], [0, 0, 1, 1], [], []>, precision = #tpu.contract_precision<fp32>} : vector<8x8xf32>, vector<8x128xf32>, vector<8x128xf32> -> vector<8x128xf32>
    %c0_11 = arith.constant 0 : index
    %c0_12 = arith.constant 0 : index
    %25 = vector.load %arg6[%c0_11, %c0_12] : memref<8x128xf32, #tpu.memory_space<vmem>>, vector<8x128xf32>
    tpu.vector_store %arg6[%c0_11, %c0_12], %24 {strides = array<i32>} : memref<8x128xf32, #tpu.memory_space<vmem>>, vector<8x128xf32>,
    return
  }
  func.func @transform_0(%arg0: i32) -> (i32, i32) {
    %c0_i32 = arith.constant 0 : i32
    %c0_i32_0 = arith.constant 0 : i32
    return %arg0, %c0_i32 : i32, i32
  }
  func.func @transform_1(%arg0: i32) -> (i32, i32) {
    %c0_i32 = arith.constant 0 : i32
    %c0_i32_0 = arith.constant 0 : i32
    return %arg0, %c0_i32 : i32, i32
  }
  func.func @transform_2(%arg0: i32) -> (i32, i32) {
    %c0_i32 = arith.constant 0 : i32
    %c0_i32_0 = arith.constant 0 : i32
    %c0_i32_1 = arith.constant 0 : i32
    return %c0_i32, %c0_i32_0 : i32, i32
  }
  func.func @transform_3(%arg0: i32) -> (i32, i32) {
    %c0_i32 = arith.constant 0 : i32
    %c0_i32_0 = arith.constant 0 : i32
    %c0_i32_1 = arith.constant 0 : i32
    return %c0_i32, %c0_i32_0 : i32, i32
  }
  func.func @transform_4(%arg0: i32) -> (i32, i32) {
    %c0_i32 = arith.constant 0 : i32
    %c0_i32_0 = arith.constant 0 : i32
    return %arg0, %c0_i32 : i32, i32
  }
  func.func @transform_5(%arg0: i32) -> (i32, i32) {
    %c0_i32 = arith.constant 0 : i32
    %c0_i32_0 = arith.constant 0 : i32
    return %arg0, %c0_i32 : i32, i32
  }
}

</mosaic_0001>

<llo_original>
// kernel: tpu_custom_call.1
$region0: #{tpu_custom_call.1}
  #allocation0 [shape = 'u32[]', space=smem, size = 0x4, offset = 0x4, fixed_abs, tag = 'smem constant byte address 0x4 - core index']
  #allocation1 [shape = 'u32[144,128]{1,0:T(1,128)}', space=vmem, size = 0x12000, scoped, tag = 'internal scratch']
  %s0 = inlined_call_operand.vmem [shape: s32[8,1], index: 0, kind: input, shape index: {}]
  %s1 = inlined_call_operand.vmem [shape: s32[8,1], index: 1, kind: input, shape index: {}]
  %s2 = inlined_call_operand.vmem [shape: f32[16,128], index: 2, kind: input, shape index: {}]
  %s3 = inlined_call_operand.hbm [shape: f32[8,128], index: 3, kind: input, shape index: {}]
  %s4 = inlined_call_operand.hbm [shape: f32[8,128], index: 4, kind: output, shape index: {0}]
  %s5 = inlined_call_operand.hbm [shape: f32[8,128], index: 5, kind: output, shape index: {1}]
  %6 = xla_tuple %s4, %s5
  %s7 = sld [smem:[#allocation0]]
  $region38: #{tpu_custom_call.1} parent=0
    _
  %s9 = ssub.s32 1, %s7
  %s10 = scalar_select 0, %s9, %s7
  $region1: #{tpu_custom_call.1} parent=0
    #allocation2 [shape = 'u8[4096]{0}', space=vmem, size = 0x1000, scoped, tag = 'input window, operand 3, single buffered']
    #allocation3 [shape = 's32[1]{0}', space=sflag, size = 0x4, scoped, tag = 'scoped memory for tpu_custom_call.1']
    #allocation4 [shape = 's32[1]{0}', space=sflag, size = 0x4, scoped, tag = 'scoped memory for tpu_custom_call.1']
    #allocation5 [shape = 'u8[4096]{0}', space=vmem, size = 0x1000, scoped, tag = 'output window, operand 0, single buffered']
    #allocation6 [shape = 'u8[4096]{0}', space=vmem, size = 0x1000, scoped, tag = 'output window, operand 1, single buffered']
    #allocation7 [shape = 's32[1]{0}', space=sflag, size = 0x4, scoped, tag = 'scoped memory for tpu_custom_call.1']
    %11 = vsyncpa [#allocation3], 0
    %12 = vsyncpa [#allocation4], 0
    %13 = vsyncpa [#allocation7], 0
    // Predicated region
    $region2: #{tpu_custom_call.1} parent=1 // pred_check
      _
    $region3: #{tpu_custom_call.1} parent=1 // pred_check_branch
      %15 = sbr.rel (0) target = $region5
    $region4: #{tpu_custom_call.1} parent=1 // pred_region
      _
    $region5: #{tpu_custom_call.1} parent=1 // pred_fallthru
      _
    // Predicated region
    $region6: #{tpu_custom_call.1} parent=1 // pred_check
      _
    $region7: #{tpu_custom_call.1} parent=1 // pred_check_branch
      %17 = sbr.rel (0) target = $region9
    $region8: #{tpu_custom_call.1} parent=1 // pred_region
      _
    $region9: #{tpu_custom_call.1} parent=1 // pred_fallthru
      _
    // Predicated region
    $region10: #{tpu_custom_call.1} parent=1 // pred_check
      _
    $region11: #{tpu_custom_call.1} parent=1 // pred_check_branch
      %19 = sbr.rel (0) target = $region13
    $region12: #{tpu_custom_call.1} parent=1 // pred_region
      _
    $region13: #{tpu_custom_call.1} parent=1 // pred_fallthru
      _
    // Predicated region
    $region14: #{tpu_custom_call.1} parent=1 // pred_check
      _
    $region15: #{tpu_custom_call.1} parent=1 // pred_check_branch
      %21 = sbr.rel (0) target = $region17
    $region16: #{tpu_custom_call.1} parent=1 // pred_region
      %s23 = ssub.s32 128, 128
      %24 = vsyncadd [#allocation3], %s23
      %s26 = sshll.u32 [#allocation2], 4
      %s27 = int_to_ptr.vmem [resolvable:$true] %s26
      %29 = dma.hbm_to_vmem [thread:$0]  %s3, 128, %s27, [#allocation3]
    $region17: #{tpu_custom_call.1} parent=1 // pred_fallthru
      _
    // Predicated region
    $region18: #{tpu_custom_call.1} parent=1 // pred_check
      _
    $region19: #{tpu_custom_call.1} parent=1 // pred_check_branch
      %31 = sbr.rel (0) target = $region21
    $region20: #{tpu_custom_call.1} parent=1 // pred_region
      %32 = dma.done [#allocation3], 128
    $region21: #{tpu_custom_call.1} parent=1 // pred_fallthru
      _
    %v33 = vld [vmem:[%s0] sm:$0xff]
    %vm34 = vcmp.gt.s32.totalorder %v33, 0
    %v35 = vsel %vm34, %v33, 0
    %vm36 = vcmp.lt.s32.totalorder %v35, 15
    %v37 = vsel %vm36, %v35, 15
    %v38 = vld [vmem:[%s1] sm:$0xff]
    %vm39 = vcmp.gt.s32.totalorder %v38, 0
    %v40 = vsel %vm39, %v38, 0
    %vm41 = vcmp.lt.s32.totalorder %v40, 7
    %v42 = vsel %vm41, %v40, 7
    %v43 = vlaneseq
    %v44 = vand.u32 %v43, 127
    %45 = vset.pattern.permute.xlu0 0
    %46 = vperm.xlu0 %45, %v37
    %v47 = vpop.permute.xlu0 %46
    %vm48 = vcmp.eq.s32.totalorder %v44, %v47
    %v49 = vsel %vm48, 1, 0
    %v50 = vcvt.s32.f32 %v49
    %v51 = vld [vmem:[%s2] sm:$0xff]
    %v52 = vld [vmem:[%s2 + $0x8] sm:$0xff]
    %vm53 = vcmask 130048
    %v55 = vsel %vm53, %v50, 0
    %57 = vmatprep.subr.mxu0 0.0
    %58 = vmatpush1.msra.mxu0 0.0
    %59 = vmatprep.subr.mxu0 0.0
    %60 = vmatpush1.msra.mxu0 0.0
    %61 = vmatprep.subr.mxu0 0.0
    %62 = vmatpush1.msra.mxu0 0.0
    %63 = vmatprep.subr.mxu0 0.0
    %64 = vmatpush1.msra.mxu0 0.0
    %65 = vmatprep.subr.mxu0 0.0
    %66 = vmatpush1.msra.mxu0 0.0
    %67 = vmatprep.subr.mxu0 0.0
    %68 = vmatpush1.msra.mxu0 0.0
    %69 = vmatprep.subr.mxu0 0.0
    %70 = vmatpush1.msra.mxu0 0.0
    %71 = vmatprep.subr.mxu0 0.0
    %72 = vmatpush1.msra.mxu0 0.0
    %73 = vmatprep.subr.mxu0 0.0
    %74 = vmatpush1.msra.mxu0 0.0
    %75 = vmatprep.subr.mxu0 0.0
    %76 = vmatpush1.msra.mxu0 0.0
    %77 = vmatprep.subr.mxu0 0.0
    %78 = vmatpush1.msra.mxu0 0.0
    %79 = vmatprep.subr.mxu0 0.0
    %80 = vmatpush1.msra.mxu0 0.0
    %81 = vmatprep.subr.mxu0 0.0
    %82 = vmatpush1.msra.mxu0 0.0
    %83 = vmatprep.subr.mxu0 0.0
    %84 = vmatpush1.msra.mxu0 0.0
    %85 = vmatprep.subr.mxu0 0.0
    %v86 = vand.u32 %v52, 4294901760
    %87 = vmatpush1.msra.mxu0 %v86
    %88 = vmatprep.subr.mxu0 0.0
    %v89 = vand.u32 %v51, 4294901760
    %90 = vmatpush1.msra.mxu0 %v89
    %91 = vmatprep.subr.mxu0 0.0
    %92 = vmatpush2.msra.mxu0 0.0
    %93 = vmatprep.subr.mxu0 0.0
    %94 = vmatpush2.msra.mxu0 0.0
    %95 = vmatprep.subr.mxu0 0.0
    %96 = vmatpush2.msra.mxu0 0.0
    %97 = vmatprep.subr.mxu0 0.0
    %98 = vmatpush2.msra.mxu0 0.0
    %99 = vmatprep.subr.mxu0 0.0
    %100 = vmatpush2.msra.mxu0 0.0
    %101 = vmatprep.subr.mxu0 0.0
    %102 = vmatpush2.msra.mxu0 0.0
    %103 = vmatprep.subr.mxu0 0.0
    %104 = vmatpush2.msra.mxu0 0.0
    %105 = vmatprep.subr.mxu0 0.0
    %106 = vmatpush2.msra.mxu0 0.0
    %107 = vmatprep.subr.mxu0 0.0
    %108 = vmatpush2.msra.mxu0 0.0
    %109 = vmatprep.subr.mxu0 0.0
    %110 = vmatpush2.msra.mxu0 0.0
    %111 = vmatprep.subr.mxu0 0.0
    %112 = vmatpush2.msra.mxu0 0.0
    %113 = vmatprep.subr.mxu0 0.0
    %114 = vmatpush2.msra.mxu0 0.0
    %115 = vmatprep.subr.mxu0 0.0
    %116 = vmatpush2.msra.mxu0 0.0
    %117 = vmatprep.subr.mxu0 0.0
    %118 = vmatpush2.msra.mxu0 0.0
    %119 = vmatprep.subr.mxu0 0.0
    %120 = vmatpush2.msra.mxu0 0.0
    %121 = vmatprep.subr.mxu0 0.0
    %122 = vmatpush2.msra.mxu0 0.0
    %123 = vmatprep.mubr.f32.mxu0 0.0
    %v124 = vand.u32 %v55, 4294901760
    %v125 = vsub.f32 %v55, %v124
    %v126 = vand.u32 %v125, 4294901760
    %v127 = vsub.f32 %v125, %v126
    %v128 = vand.u32 %v127, 4294901760
    %129 = vmatmul.mubr.f32.gmra.mxu0 %v128
    %v130 = vpop.f32.mrf.mxu0
    %v131 = vadd.f32 0.0, %v130
    %v132 = vpop.f32.mrf.mxu0
    %133 = vdwg.mxu0
    %134 = vmatprep.subr.mxu0 0.0
    %135 = vmatpush1.msra.mxu0 0.0
    %136 = vmatprep.subr.mxu0 0.0
    %137 = vmatpush1.msra.mxu0 0.0
    %138 = vmatprep.subr.mxu0 0.0
    %139 = vmatpush1.msra.mxu0 0.0
    %140 = vmatprep.subr.mxu0 0.0
    %141 = vmatpush1.msra.mxu0 0.0
    %142 = vmatprep.subr.mxu0 0.0
    %143 = vmatpush1.msra.mxu0 0.0
    %144 = vmatprep.subr.mxu0 0.0
    %145 = vmatpush1.msra.mxu0 0.0
    %146 = vmatprep.subr.mxu0 0.0
    %147 = vmatpush1.msra.mxu0 0.0
    %148 = vmatprep.subr.mxu0 0.0
    %149 = vmatpush1.msra.mxu0 0.0
    %150 = vmatprep.subr.mxu0 0.0
    %151 = vmatpush1.msra.mxu0 0.0
    %152 = vmatprep.subr.mxu0 0.0
    %153 = vmatpush1.msra.mxu0 0.0
    %154 = vmatprep.subr.mxu0 0.0
    %155 = vmatpush1.msra.mxu0 0.0
    %156 = vmatprep.subr.mxu0 0.0
    %157 = vmatpush1.msra.mxu0 0.0
    %158 = vmatprep.subr.mxu0 0.0
    %159 = vmatpush1.msra.mxu0 0.0
    %160 = vmatprep.subr.mxu0 0.0
    %161 = vmatpush1.msra.mxu0 0.0
    %162 = vmatprep.subr.mxu0 0.0
    %v163 = vand.u32 %v52, 4294901760
    %v164 = vsub.f32 %v52, %v163
    %v165 = vand.u32 %v164, 4294901760
    %v166 = vsub.f32 %v164, %v165
    %v167 = vand.u32 %v166, 4294901760
    %168 = vmatpush1.msra.mxu0 %v167
    %169 = vmatprep.subr.mxu0 0.0
    %v170 = vand.u32 %v51, 4294901760
    %v171 = vsub.f32 %v51, %v170
    %v172 = vand.u32 %v171, 4294901760
    %v173 = vsub.f32 %v171, %v172
    %v174 = vand.u32 %v173, 4294901760
    %175 = vmatpush1.msra.mxu0 %v174
    %176 = vmatprep.subr.mxu0 0.0
    %177 = vmatpush2.msra.mxu0 0.0
    %178 = vmatprep.subr.mxu0 0.0
    %179 = vmatpush2.msra.mxu0 0.0
    %180 = vmatprep.subr.mxu0 0.0
    %181 = vmatpush2.msra.mxu0 0.0
    %182 = vmatprep.subr.mxu0 0.0
    %183 = vmatpush2.msra.mxu0 0.0
    %184 = vmatprep.subr.mxu0 0.0
    %185 = vmatpush2.msra.mxu0 0.0
    %186 = vmatprep.subr.mxu0 0.0
    %187 = vmatpush2.msra.mxu0 0.0
    %188 = vmatprep.subr.mxu0 0.0
    %189 = vmatpush2.msra.mxu0 0.0
    %190 = vmatprep.subr.mxu0 0.0
    %191 = vmatpush2.msra.mxu0 0.0
    %192 = vmatprep.subr.mxu0 0.0
    %193 = vmatpush2.msra.mxu0 0.0
    %194 = vmatprep.subr.mxu0 0.0
    %195 = vmatpush2.msra.mxu0 0.0
    %196 = vmatprep.subr.mxu0 0.0
    %197 = vmatpush2.msra.mxu0 0.0
    %198 = vmatprep.subr.mxu0 0.0
    %199 = vmatpush2.msra.mxu0 0.0
    %200 = vmatprep.subr.mxu0 0.0
    %201 = vmatpush2.msra.mxu0 0.0
    %202 = vmatprep.subr.mxu0 0.0
    %203 = vmatpush2.msra.mxu0 0.0
    %204 = vmatprep.subr.mxu0 0.0
    %205 = vmatpush2.msra.mxu0 0.0
    %206 = vmatprep.subr.mxu0 0.0
    %207 = vmatpush2.msra.mxu0 0.0
    %208 = vmatprep.mubr.f32.mxu0 0.0
    %v209 = vand.u32 %v55, 4294901760
    %210 = vmatmul.mubr.f32.gmra.mxu0 %v209
    %v211 = vpop.f32.mrf.mxu0
    %v212 = vadd.f32 %v131, %v211
    %v213 = vpop.f32.mrf.mxu0
    %214 = vdwg.mxu0
    %215 = vmatprep.subr.mxu0 0.0
    %216 = vmatpush1.msra.mxu0 0.0
    %217 = vmatprep.subr.mxu0 0.0
    %218 = vmatpush1.msra.mxu0 0.0
    %219 = vmatprep.subr.mxu0 0.0
    %220 = vmatpush1.msra.mxu0 0.0
    %221 = vmatprep.subr.mxu0 0.0
    %222 = vmatpush1.msra.mxu0 0.0
    %223 = vmatprep.subr.mxu0 0.0
    %224 = vmatpush1.msra.mxu0 0.0
    %225 = vmatprep.subr.mxu0 0.0
    %226 = vmatpush1.msra.mxu0 0.0
    %227 = vmatprep.subr.mxu0 0.0
    %228 = vmatpush1.msra.mxu0 0.0
    %229 = vmatprep.subr.mxu0 0.0
    %230 = vmatpush1.msra.mxu0 0.0
    %231 = vmatprep.subr.mxu0 0.0
    %232 = vmatpush1.msra.mxu0 0.0
    %233 = vmatprep.subr.mxu0 0.0
    %234 = vmatpush1.msra.mxu0 0.0
    %235 = vmatprep.subr.mxu0 0.0
    %236 = vmatpush1.msra.mxu0 0.0
    %237 = vmatprep.subr.mxu0 0.0
    %238 = vmatpush1.msra.mxu0 0.0
    %239 = vmatprep.subr.mxu0 0.0
    %240 = vmatpush1.msra.mxu0 0.0
    %241 = vmatprep.subr.mxu0 0.0
    %242 = vmatpush1.msra.mxu0 0.0
    %243 = vmatprep.subr.mxu0 0.0
    %v244 = vand.u32 %v52, 4294901760
    %v245 = vsub.f32 %v52, %v244
    %246 = vmatpush1.msra.mxu0 %v245
    %247 = vmatprep.subr.mxu0 0.0
    %v248 = vand.u32 %v51, 4294901760
    %v249 = vsub.f32 %v51, %v248
    %250 = vmatpush1.msra.mxu0 %v249
    %251 = vmatprep.subr.mxu0 0.0
    %252 = vmatpush2.msra.mxu0 0.0
    %253 = vmatprep.subr.mxu0 0.0
    %254 = vmatpush2.msra.mxu0 0.0
    %255 = vmatprep.subr.mxu0 0.0
    %256 = vmatpush2.msra.mxu0 0.0
    %257 = vmatprep.subr.mxu0 0.0
    %258 = vmatpush2.msra.mxu0 0.0
    %259 = vmatprep.subr.mxu0 0.0
    %260 = vmatpush2.msra.mxu0 0.0
    %261 = vmatprep.subr.mxu0 0.0
    %262 = vmatpush2.msra.mxu0 0.0
    %263 = vmatprep.subr.mxu0 0.0
    %264 = vmatpush2.msra.mxu0 0.0
    %265 = vmatprep.subr.mxu0 0.0
    %266 = vmatpush2.msra.mxu0 0.0
    %267 = vmatprep.subr.mxu0 0.0
    %268 = vmatpush2.msra.mxu0 0.0
    %269 = vmatprep.subr.mxu0 0.0
    %270 = vmatpush2.msra.mxu0 0.0
    %271 = vmatprep.subr.mxu0 0.0
    %272 = vmatpush2.msra.mxu0 0.0
    %273 = vmatprep.subr.mxu0 0.0
    %274 = vmatpush2.msra.mxu0 0.0
    %275 = vmatprep.subr.mxu0 0.0
    %276 = vmatpush2.msra.mxu0 0.0
    %277 = vmatprep.subr.mxu0 0.0
    %278 = vmatpush2.msra.mxu0 0.0
    %279 = vmatprep.subr.mxu0 0.0
    %280 = vmatpush2.msra.mxu0 0.0
    %281 = vmatprep.subr.mxu0 0.0
    %282 = vmatpush2.msra.mxu0 0.0
    %283 = vmatprep.mubr.f32.mxu0 0.0
    %v284 = vand.u32 %v55, 4294901760
    %v285 = vsub.f32 %v55, %v284
    %286 = vmatmul.mubr.f32.gmra.mxu0 %v285
    %v287 = vpop.f32.mrf.mxu0
    %v288 = vadd.f32 %v212, %v287
    %v289 = vpop.f32.mrf.mxu0
    %290 = vdwg.mxu0
    %291 = vmatprep.subr.mxu0 0.0
    %292 = vmatpush1.msra.mxu0 0.0
    %293 = vmatprep.subr.mxu0 0.0
    %294 = vmatpush1.msra.mxu0 0.0
    %295 = vmatprep.subr.mxu0 0.0
    %296 = vmatpush1.msra.mxu0 0.0
    %297 = vmatprep.subr.mxu0 0.0
    %298 = vmatpush1.msra.mxu0 0.0
    %299 = vmatprep.subr.mxu0 0.0
    %300 = vmatpush1.msra.mxu0 0.0
    %301 = vmatprep.subr.mxu0 0.0
    %302 = vmatpush1.msra.mxu0 0.0
    %303 = vmatprep.subr.mxu0 0.0
    %304 = vmatpush1.msra.mxu0 0.0
    %305 = vmatprep.subr.mxu0 0.0
    %306 = vmatpush1.msra.mxu0 0.0
    %307 = vmatprep.subr.mxu0 0.0
    %308 = vmatpush1.msra.mxu0 0.0
    %309 = vmatprep.subr.mxu0 0.0
    %310 = vmatpush1.msra.mxu0 0.0
    %311 = vmatprep.subr.mxu0 0.0
    %312 = vmatpush1.msra.mxu0 0.0
    %313 = vmatprep.subr.mxu0 0.0
    %314 = vmatpush1.msra.mxu0 0.0
    %315 = vmatprep.subr.mxu0 0.0
    %316 = vmatpush1.msra.mxu0 0.0
    %317 = vmatprep.subr.mxu0 0.0
    %318 = vmatpush1.msra.mxu0 0.0
    %319 = vmatprep.subr.mxu0 0.0
    %v320 = vand.u32 %v52, 4294901760
    %321 = vmatpush1.msra.mxu0 %v320
    %322 = vmatprep.subr.mxu0 0.0
    %v323 = vand.u32 %v51, 4294901760
    %324 = vmatpush1.msra.mxu0 %v323
    %325 = vmatprep.subr.mxu0 0.0
    %326 = vmatpush2.msra.mxu0 0.0
    %327 = vmatprep.subr.mxu0 0.0
    %328 = vmatpush2.msra.mxu0 0.0
    %329 = vmatprep.subr.mxu0 0.0
    %330 = vmatpush2.msra.mxu0 0.0
    %331 = vmatprep.subr.mxu0 0.0
    %332 = vmatpush2.msra.mxu0 0.0
    %333 = vmatprep.subr.mxu0 0.0
    %334 = vmatpush2.msra.mxu0 0.0
    %335 = vmatprep.subr.mxu0 0.0
    %336 = vmatpush2.msra.mxu0 0.0
    %337 = vmatprep.subr.mxu0 0.0
    %338 = vmatpush2.msra.mxu0 0.0
    %339 = vmatprep.subr.mxu0 0.0
    %340 = vmatpush2.msra.mxu0 0.0
    %341 = vmatprep.subr.mxu0 0.0
    %342 = vmatpush2.msra.mxu0 0.0
    %343 = vmatprep.subr.mxu0 0.0
    %344 = vmatpush2.msra.mxu0 0.0
    %345 = vmatprep.subr.mxu0 0.0
    %346 = vmatpush2.msra.mxu0 0.0
    %347 = vmatprep.subr.mxu0 0.0
    %348 = vmatpush2.msra.mxu0 0.0
    %349 = vmatprep.subr.mxu0 0.0
    %350 = vmatpush2.msra.mxu0 0.0
    %351 = vmatprep.subr.mxu0 0.0
    %352 = vmatpush2.msra.mxu0 0.0
    %353 = vmatprep.subr.mxu0 0.0
    %354 = vmatpush2.msra.mxu0 0.0
    %355 = vmatprep.subr.mxu0 0.0
    %356 = vmatpush2.msra.mxu0 0.0
    %357 = vmatprep.mubr.f32.mxu0 0.0
    %v358 = vand.u32 %v55, 4294901760
    %v359 = vsub.f32 %v55, %v358
    %v360 = vand.u32 %v359, 4294901760
    %361 = vmatmul.mubr.f32.gmra.mxu0 %v360
    %v362 = vpop.f32.mrf.mxu0
    %v363 = vadd.f32 %v288, %v362
    %v364 = vpop.f32.mrf.mxu0
    %365 = vdwg.mxu0
    %366 = vmatprep.subr.mxu0 0.0
    %367 = vmatpush1.msra.mxu0 0.0
    %368 = vmatprep.subr.mxu0 0.0
    %369 = vmatpush1.msra.mxu0 0.0
    %370 = vmatprep.subr.mxu0 0.0
    %371 = vmatpush1.msra.mxu0 0.0
    %372 = vmatprep.subr.mxu0 0.0
    %373 = vmatpush1.msra.mxu0 0.0
    %374 = vmatprep.subr.mxu0 0.0
    %375 = vmatpush1.msra.mxu0 0.0
    %376 = vmatprep.subr.mxu0 0.0
    %377 = vmatpush1.msra.mxu0 0.0
    %378 = vmatprep.subr.mxu0 0.0
    %379 = vmatpush1.msra.mxu0 0.0
    %380 = vmatprep.subr.mxu0 0.0
    %381 = vmatpush1.msra.mxu0 0.0
    %382 = vmatprep.subr.mxu0 0.0
    %383 = vmatpush1.msra.mxu0 0.0
    %384 = vmatprep.subr.mxu0 0.0
    %385 = vmatpush1.msra.mxu0 0.0
    %386 = vmatprep.subr.mxu0 0.0
    %387 = vmatpush1.msra.mxu0 0.0
    %388 = vmatprep.subr.mxu0 0.0
    %389 = vmatpush1.msra.mxu0 0.0
    %390 = vmatprep.subr.mxu0 0.0
    %391 = vmatpush1.msra.mxu0 0.0
    %392 = vmatprep.subr.mxu0 0.0
    %393 = vmatpush1.msra.mxu0 0.0
    %394 = vmatprep.subr.mxu0 0.0
    %v395 = vand.u32 %v52, 4294901760
    %v396 = vsub.f32 %v52, %v395
    %v397 = vand.u32 %v396, 4294901760
    %398 = vmatpush1.msra.mxu0 %v397
    %399 = vmatprep.subr.mxu0 0.0
    %v400 = vand.u32 %v51, 4294901760
    %v401 = vsub.f32 %v51, %v400
    %v402 = vand.u32 %v401, 4294901760
    %403 = vmatpush1.msra.mxu0 %v402
    %404 = vmatprep.subr.mxu0 0.0
    %405 = vmatpush2.msra.mxu0 0.0
    %406 = vmatprep.subr.mxu0 0.0
    %407 = vmatpush2.msra.mxu0 0.0
    %408 = vmatprep.subr.mxu0 0.0
    %409 = vmatpush2.msra.mxu0 0.0
    %410 = vmatprep.subr.mxu0 0.0
    %411 = vmatpush2.msra.mxu0 0.0
    %412 = vmatprep.subr.mxu0 0.0
    %413 = vmatpush2.msra.mxu0 0.0
    %414 = vmatprep.subr.mxu0 0.0
    %415 = vmatpush2.msra.mxu0 0.0
    %416 = vmatprep.subr.mxu0 0.0
    %417 = vmatpush2.msra.mxu0 0.0
    %418 = vmatprep.subr.mxu0 0.0
    %419 = vmatpush2.msra.mxu0 0.0
    %420 = vmatprep.subr.mxu0 0.0
    %421 = vmatpush2.msra.mxu0 0.0
    %422 = vmatprep.subr.mxu0 0.0
    %423 = vmatpush2.msra.mxu0 0.0
    %424 = vmatprep.subr.mxu0 0.0
    %425 = vmatpush2.msra.mxu0 0.0
    %426 = vmatprep.subr.mxu0 0.0
    %427 = vmatpush2.msra.mxu0 0.0
    %428 = vmatprep.subr.mxu0 0.0
    %429 = vmatpush2.msra.mxu0 0.0
    %430 = vmatprep.subr.mxu0 0.0
    %431 = vmatpush2.msra.mxu0 0.0
    %432 = vmatprep.subr.mxu0 0.0
    %433 = vmatpush2.msra.mxu0 0.0
    %434 = vmatprep.subr.mxu0 0.0
    %435 = vmatpush2.msra.mxu0 0.0
    %436 = vmatprep.mubr.f32.mxu0 0.0
    %v437 = vand.u32 %v55, 4294901760
    %438 = vmatmul.mubr.f32.gmra.mxu0 %v437
    %v439 = vpop.f32.mrf.mxu0
    %v440 = vadd.f32 %v363, %v439
    %v441 = vpop.f32.mrf.mxu0
    %442 = vdwg.mxu0
    %443 = vmatprep.subr.mxu0 0.0
    %444 = vmatpush1.msra.mxu0 0.0
    %445 = vmatprep.subr.mxu0 0.0
    %446 = vmatpush1.msra.mxu0 0.0
    %447 = vmatprep.subr.mxu0 0.0
    %448 = vmatpush1.msra.mxu0 0.0
    %449 = vmatprep.subr.mxu0 0.0
    %450 = vmatpush1.msra.mxu0 0.0
    %451 = vmatprep.subr.mxu0 0.0
    %452 = vmatpush1.msra.mxu0 0.0
    %453 = vmatprep.subr.mxu0 0.0
    %454 = vmatpush1.msra.mxu0 0.0
    %455 = vmatprep.subr.mxu0 0.0
    %456 = vmatpush1.msra.mxu0 0.0
    %457 = vmatprep.subr.mxu0 0.0
    %458 = vmatpush1.msra.mxu0 0.0
    %459 = vmatprep.subr.mxu0 0.0
    %460 = vmatpush1.msra.mxu0 0.0
    %461 = vmatprep.subr.mxu0 0.0
    %462 = vmatpush1.msra.mxu0 0.0
    %463 = vmatprep.subr.mxu0 0.0
    %464 = vmatpush1.msra.mxu0 0.0
    %465 = vmatprep.subr.mxu0 0.0
    %466 = vmatpush1.msra.mxu0 0.0
    %467 = vmatprep.subr.mxu0 0.0
    %468 = vmatpush1.msra.mxu0 0.0
    %469 = vmatprep.subr.mxu0 0.0
    %470 = vmatpush1.msra.mxu0 0.0
    %471 = vmatprep.subr.mxu0 0.0
    %v472 = vand.u32 %v52, 4294901760
    %473 = vmatpush1.msra.mxu0 %v472
    %474 = vmatprep.subr.mxu0 0.0
    %v475 = vand.u32 %v51, 4294901760
    %476 = vmatpush1.msra.mxu0 %v475
    %477 = vmatprep.subr.mxu0 0.0
    %478 = vmatpush2.msra.mxu0 0.0
    %479 = vmatprep.subr.mxu0 0.0
    %480 = vmatpush2.msra.mxu0 0.0
    %481 = vmatprep.subr.mxu0 0.0
    %482 = vmatpush2.msra.mxu0 0.0
    %483 = vmatprep.subr.mxu0 0.0
    %484 = vmatpush2.msra.mxu0 0.0
    %485 = vmatprep.subr.mxu0 0.0
    %486 = vmatpush2.msra.mxu0 0.0
    %487 = vmatprep.subr.mxu0 0.0
    %488 = vmatpush2.msra.mxu0 0.0
    %489 = vmatprep.subr.mxu0 0.0
    %490 = vmatpush2.msra.mxu0 0.0
    %491 = vmatprep.subr.mxu0 0.0
    %492 = vmatpush2.msra.mxu0 0.0
    %493 = vmatprep.subr.mxu0 0.0
    %494 = vmatpush2.msra.mxu0 0.0
    %495 = vmatprep.subr.mxu0 0.0
    %496 = vmatpush2.msra.mxu0 0.0
    %497 = vmatprep.subr.mxu0 0.0
    %498 = vmatpush2.msra.mxu0 0.0
    %499 = vmatprep.subr.mxu0 0.0
    %500 = vmatpush2.msra.mxu0 0.0
    %501 = vmatprep.subr.mxu0 0.0
    %502 = vmatpush2.msra.mxu0 0.0
    %503 = vmatprep.subr.mxu0 0.0
    %504 = vmatpush2.msra.mxu0 0.0
    %505 = vmatprep.subr.mxu0 0.0
    %506 = vmatpush2.msra.mxu0 0.0
    %507 = vmatprep.subr.mxu0 0.0
    %508 = vmatpush2.msra.mxu0 0.0
    %509 = vmatprep.mubr.f32.mxu0 0.0
    %v510 = vand.u32 %v55, 4294901760
    %511 = vmatmul.mubr.f32.gmra.mxu0 %v510
    %v512 = vpop.f32.mrf.mxu0
    %v513 = vadd.f32 %v440, %v512
    %v514 = vpop.f32.mrf.mxu0
    %515 = vdwg.mxu0
    %516 = vst [vmem:[#allocation5] sm:$0xff] %v513
    %517 = vset.pattern.permute.xlu0 0
    %518 = vperm.xlu0 %517, %v42
    %v519 = vpop.permute.xlu0 %518
    %vm520 = vcmp.eq.s32.totalorder %v44, %v519
    %v521 = vsel %vm520, 1, 0
    %v522 = vcvt.s32.f32 %v521
    %v523 = vld [vmem:[#allocation2] sm:$0xff]
    %vm524 = vcmask 64512
    %v526 = vsel %vm524, %v522, 0
    %528 = vmatprep.subr.mxu0 0.0
    %529 = vmatpush1.msra.mxu0 0.0
    %530 = vmatprep.subr.mxu0 0.0
    %531 = vmatpush1.msra.mxu0 0.0
    %532 = vmatprep.subr.mxu0 0.0
    %533 = vmatpush1.msra.mxu0 0.0
    %534 = vmatprep.subr.mxu0 0.0
    %535 = vmatpush1.msra.mxu0 0.0
    %536 = vmatprep.subr.mxu0 0.0
    %537 = vmatpush1.msra.mxu0 0.0
    %538 = vmatprep.subr.mxu0 0.0
    %539 = vmatpush1.msra.mxu0 0.0
    %540 = vmatprep.subr.mxu0 0.0
    %541 = vmatpush1.msra.mxu0 0.0
    %542 = vmatprep.subr.mxu0 0.0
    %543 = vmatpush1.msra.mxu0 0.0
    %544 = vmatprep.subr.mxu0 0.0
    %545 = vmatpush1.msra.mxu0 0.0
    %546 = vmatprep.subr.mxu0 0.0
    %547 = vmatpush1.msra.mxu0 0.0
    %548 = vmatprep.subr.mxu0 0.0
    %549 = vmatpush1.msra.mxu0 0.0
    %550 = vmatprep.subr.mxu0 0.0
    %551 = vmatpush1.msra.mxu0 0.0
    %552 = vmatprep.subr.mxu0 0.0
    %553 = vmatpush1.msra.mxu0 0.0
    %554 = vmatprep.subr.mxu0 0.0
    %555 = vmatpush1.msra.mxu0 0.0
    %556 = vmatprep.subr.mxu0 0.0
    %557 = vmatpush1.msra.mxu0 0.0
    %558 = vmatprep.subr.mxu0 0.0
    %v559 = vand.u32 %v523, 4294901760
    %560 = vmatpush1.msra.mxu0 %v559
    %561 = vmatprep.subr.mxu0 0.0
    %562 = vmatpush2.msra.mxu0 0.0
    %563 = vmatprep.subr.mxu0 0.0
    %564 = vmatpush2.msra.mxu0 0.0
    %565 = vmatprep.subr.mxu0 0.0
    %566 = vmatpush2.msra.mxu0 0.0
    %567 = vmatprep.subr.mxu0 0.0
    %568 = vmatpush2.msra.mxu0 0.0
    %569 = vmatprep.subr.mxu0 0.0
    %570 = vmatpush2.msra.mxu0 0.0
    %571 = vmatprep.subr.mxu0 0.0
    %572 = vmatpush2.msra.mxu0 0.0
    %573 = vmatprep.subr.mxu0 0.0
    %574 = vmatpush2.msra.mxu0 0.0
    %575 = vmatprep.subr.mxu0 0.0
    %576 = vmatpush2.msra.mxu0 0.0
    %577 = vmatprep.subr.mxu0 0.0
    %578 = vmatpush2.msra.mxu0 0.0
    %579 = vmatprep.subr.mxu0 0.0
    %580 = vmatpush2.msra.mxu0 0.0
    %581 = vmatprep.subr.mxu0 0.0
    %582 = vmatpush2.msra.mxu0 0.0
    %583 = vmatprep.subr.mxu0 0.0
    %584 = vmatpush2.msra.mxu0 0.0
    %585 = vmatprep.subr.mxu0 0.0
    %586 = vmatpush2.msra.mxu0 0.0
    %587 = vmatprep.subr.mxu0 0.0
    %588 = vmatpush2.msra.mxu0 0.0
    %589 = vmatprep.subr.mxu0 0.0
    %590 = vmatpush2.msra.mxu0 0.0
    %591 = vmatprep.subr.mxu0 0.0
    %592 = vmatpush2.msra.mxu0 0.0
    %593 = vmatprep.mubr.f32.mxu0 0.0
    %v594 = vand.u32 %v526, 4294901760
    %v595 = vsub.f32 %v526, %v594
    %v596 = vand.u32 %v595, 4294901760
    %v597 = vsub.f32 %v595, %v596
    %v598 = vand.u32 %v597, 4294901760
    %599 = vmatmul.mubr.f32.gmra.mxu0 %v598
    %v600 = vpop.f32.mrf.mxu0
    %v601 = vadd.f32 0.0, %v600
    %v602 = vpop.f32.mrf.mxu0
    %603 = vdwg.mxu0
    %604 = vmatprep.subr.mxu0 0.0
    %605 = vmatpush1.msra.mxu0 0.0
    %606 = vmatprep.subr.mxu0 0.0
    %607 = vmatpush1.msra.mxu0 0.0
    %608 = vmatprep.subr.mxu0 0.0
    %609 = vmatpush1.msra.mxu0 0.0
    %610 = vmatprep.subr.mxu0 0.0
    %611 = vmatpush1.msra.mxu0 0.0
    %612 = vmatprep.subr.mxu0 0.0
    %613 = vmatpush1.msra.mxu0 0.0
    %614 = vmatprep.subr.mxu0 0.0
    %615 = vmatpush1.msra.mxu0 0.0
    %616 = vmatprep.subr.mxu0 0.0
    %617 = vmatpush1.msra.mxu0 0.0
    %618 = vmatprep.subr.mxu0 0.0
    %619 = vmatpush1.msra.mxu0 0.0
    %620 = vmatprep.subr.mxu0 0.0
    %621 = vmatpush1.msra.mxu0 0.0
    %622 = vmatprep.subr.mxu0 0.0
    %623 = vmatpush1.msra.mxu0 0.0
    %624 = vmatprep.subr.mxu0 0.0
    %625 = vmatpush1.msra.mxu0 0.0
    %626 = vmatprep.subr.mxu0 0.0
    %627 = vmatpush1.msra.mxu0 0.0
    %628 = vmatprep.subr.mxu0 0.0
    %629 = vmatpush1.msra.mxu0 0.0
    %630 = vmatprep.subr.mxu0 0.0
    %631 = vmatpush1.msra.mxu0 0.0
    %632 = vmatprep.subr.mxu0 0.0
    %633 = vmatpush1.msra.mxu0 0.0
    %634 = vmatprep.subr.mxu0 0.0
    %v635 = vand.u32 %v523, 4294901760
    %v636 = vsub.f32 %v523, %v635
    %v637 = vand.u32 %v636, 4294901760
    %v638 = vsub.f32 %v636, %v637
    %v639 = vand.u32 %v638, 4294901760
    %640 = vmatpush1.msra.mxu0 %v639
    %641 = vmatprep.subr.mxu0 0.0
    %642 = vmatpush2.msra.mxu0 0.0
    %643 = vmatprep.subr.mxu0 0.0
    %644 = vmatpush2.msra.mxu0 0.0
    %645 = vmatprep.subr.mxu0 0.0
    %646 = vmatpush2.msra.mxu0 0.0
    %647 = vmatprep.subr.mxu0 0.0
    %648 = vmatpush2.msra.mxu0 0.0
    %649 = vmatprep.subr.mxu0 0.0
    %650 = vmatpush2.msra.mxu0 0.0
    %651 = vmatprep.subr.mxu0 0.0
    %652 = vmatpush2.msra.mxu0 0.0
    %653 = vmatprep.subr.mxu0 0.0
    %654 = vmatpush2.msra.mxu0 0.0
    %655 = vmatprep.subr.mxu0 0.0
    %656 = vmatpush2.msra.mxu0 0.0
    %657 = vmatprep.subr.mxu0 0.0
    %658 = vmatpush2.msra.mxu0 0.0
    %659 = vmatprep.subr.mxu0 0.0
    %660 = vmatpush2.msra.mxu0 0.0
    %661 = vmatprep.subr.mxu0 0.0
    %662 = vmatpush2.msra.mxu0 0.0
    %663 = vmatprep.subr.mxu0 0.0
    %664 = vmatpush2.msra.mxu0 0.0
    %665 = vmatprep.subr.mxu0 0.0
    %666 = vmatpush2.msra.mxu0 0.0
    %667 = vmatprep.subr.mxu0 0.0
    %668 = vmatpush2.msra.mxu0 0.0
    %669 = vmatprep.subr.mxu0 0.0
    %670 = vmatpush2.msra.mxu0 0.0
    %671 = vmatprep.subr.mxu0 0.0
    %672 = vmatpush2.msra.mxu0 0.0
    %673 = vmatprep.mubr.f32.mxu0 0.0
    %v674 = vand.u32 %v526, 4294901760
    %675 = vmatmul.mubr.f32.gmra.mxu0 %v674
    %v676 = vpop.f32.mrf.mxu0
    %v677 = vadd.f32 %v601, %v676
    %v678 = vpop.f32.mrf.mxu0
    %679 = vdwg.mxu0
    %680 = vmatprep.subr.mxu0 0.0
    %681 = vmatpush1.msra.mxu0 0.0
    %682 = vmatprep.subr.mxu0 0.0
    %683 = vmatpush1.msra.mxu0 0.0
    %684 = vmatprep.subr.mxu0 0.0
    %685 = vmatpush1.msra.mxu0 0.0
    %686 = vmatprep.subr.mxu0 0.0
    %687 = vmatpush1.msra.mxu0 0.0
    %688 = vmatprep.subr.mxu0 0.0
    %689 = vmatpush1.msra.mxu0 0.0
    %690 = vmatprep.subr.mxu0 0.0
    %691 = vmatpush1.msra.mxu0 0.0
    %692 = vmatprep.subr.mxu0 0.0
    %693 = vmatpush1.msra.mxu0 0.0
    %694 = vmatprep.subr.mxu0 0.0
    %695 = vmatpush1.msra.mxu0 0.0
    %696 = vmatprep.subr.mxu0 0.0
    %697 = vmatpush1.msra.mxu0 0.0
    %698 = vmatprep.subr.mxu0 0.0
    %699 = vmatpush1.msra.mxu0 0.0
    %700 = vmatprep.subr.mxu0 0.0
    %701 = vmatpush1.msra.mxu0 0.0
    %702 = vmatprep.subr.mxu0 0.0
    %703 = vmatpush1.msra.mxu0 0.0
    %704 = vmatprep.subr.mxu0 0.0
    %705 = vmatpush1.msra.mxu0 0.0
    %706 = vmatprep.subr.mxu0 0.0
    %707 = vmatpush1.msra.mxu0 0.0
    %708 = vmatprep.subr.mxu0 0.0
    %709 = vmatpush1.msra.mxu0 0.0
    %710 = vmatprep.subr.mxu0 0.0
    %v711 = vand.u32 %v523, 4294901760
    %v712 = vsub.f32 %v523, %v711
    %713 = vmatpush1.msra.mxu0 %v712
    %714 = vmatprep.subr.mxu0 0.0
    %715 = vmatpush2.msra.mxu0 0.0
    %716 = vmatprep.subr.mxu0 0.0
    %717 = vmatpush2.msra.mxu0 0.0
    %718 = vmatprep.subr.mxu0 0.0
    %719 = vmatpush2.msra.mxu0 0.0
    %720 = vmatprep.subr.mxu0 0.0
    %721 = vmatpush2.msra.mxu0 0.0
    %722 = vmatprep.subr.mxu0 0.0
    %723 = vmatpush2.msra.mxu0 0.0
    %724 = vmatprep.subr.mxu0 0.0
    %725 = vmatpush2.msra.mxu0 0.0
    %726 = vmatprep.subr.mxu0 0.0
    %727 = vmatpush2.msra.mxu0 0.0
    %728 = vmatprep.subr.mxu0 0.0
    %729 = vmatpush2.msra.mxu0 0.0
    %730 = vmatprep.subr.mxu0 0.0
    %731 = vmatpush2.msra.mxu0 0.0
    %732 = vmatprep.subr.mxu0 0.0
    %733 = vmatpush2.msra.mxu0 0.0
    %734 = vmatprep.subr.mxu0 0.0
    %735 = vmatpush2.msra.mxu0 0.0
    %736 = vmatprep.subr.mxu0 0.0
    %737 = vmatpush2.msra.mxu0 0.0
    %738 = vmatprep.subr.mxu0 0.0
    %739 = vmatpush2.msra.mxu0 0.0
    %740 = vmatprep.subr.mxu0 0.0
    %741 = vmatpush2.msra.mxu0 0.0
    %742 = vmatprep.subr.mxu0 0.0
    %743 = vmatpush2.msra.mxu0 0.0
    %744 = vmatprep.subr.mxu0 0.0
    %745 = vmatpush2.msra.mxu0 0.0
    %746 = vmatprep.mubr.f32.mxu0 0.0
    %v747 = vand.u32 %v526, 4294901760
    %v748 = vsub.f32 %v526, %v747
    %749 = vmatmul.mubr.f32.gmra.mxu0 %v748
    %v750 = vpop.f32.mrf.mxu0
    %v751 = vadd.f32 %v677, %v750
    %v752 = vpop.f32.mrf.mxu0
    %753 = vdwg.mxu0
    %754 = vmatprep.subr.mxu0 0.0
    %755 = vmatpush1.msra.mxu0 0.0
    %756 = vmatprep.subr.mxu0 0.0
    %757 = vmatpush1.msra.mxu0 0.0
    %758 = vmatprep.subr.mxu0 0.0
    %759 = vmatpush1.msra.mxu0 0.0
    %760 = vmatprep.subr.mxu0 0.0
    %761 = vmatpush1.msra.mxu0 0.0
    %762 = vmatprep.subr.mxu0 0.0
    %763 = vmatpush1.msra.mxu0 0.0
    %764 = vmatprep.subr.mxu0 0.0
    %765 = vmatpush1.msra.mxu0 0.0
    %766 = vmatprep.subr.mxu0 0.0
    %767 = vmatpush1.msra.mxu0 0.0
    %768 = vmatprep.subr.mxu0 0.0
    %769 = vmatpush1.msra.mxu0 0.0
    %770 = vmatprep.subr.mxu0 0.0
    %771 = vmatpush1.msra.mxu0 0.0
    %772 = vmatprep.subr.mxu0 0.0
    %773 = vmatpush1.msra.mxu0 0.0
    %774 = vmatprep.subr.mxu0 0.0
    %775 = vmatpush1.msra.mxu0 0.0
    %776 = vmatprep.subr.mxu0 0.0
    %777 = vmatpush1.msra.mxu0 0.0
    %778 = vmatprep.subr.mxu0 0.0
    %779 = vmatpush1.msra.mxu0 0.0
    %780 = vmatprep.subr.mxu0 0.0
    %781 = vmatpush1.msra.mxu0 0.0
    %782 = vmatprep.subr.mxu0 0.0
    %783 = vmatpush1.msra.mxu0 0.0
    %784 = vmatprep.subr.mxu0 0.0
    %v785 = vand.u32 %v523, 4294901760
    %786 = vmatpush1.msra.mxu0 %v785
    %787 = vmatprep.subr.mxu0 0.0
    %788 = vmatpush2.msra.mxu0 0.0
    %789 = vmatprep.subr.mxu0 0.0
    %790 = vmatpush2.msra.mxu0 0.0
    %791 = vmatprep.subr.mxu0 0.0
    %792 = vmatpush2.msra.mxu0 0.0
    %793 = vmatprep.subr.mxu0 0.0
    %794 = vmatpush2.msra.mxu0 0.0
    %795 = vmatprep.subr.mxu0 0.0
    %796 = vmatpush2.msra.mxu0 0.0
    %797 = vmatprep.subr.mxu0 0.0
    %798 = vmatpush2.msra.mxu0 0.0
    %799 = vmatprep.subr.mxu0 0.0
    %800 = vmatpush2.msra.mxu0 0.0
    %801 = vmatprep.subr.mxu0 0.0
    %802 = vmatpush2.msra.mxu0 0.0
    %803 = vmatprep.subr.mxu0 0.0
    %804 = vmatpush2.msra.mxu0 0.0
    %805 = vmatprep.subr.mxu0 0.0
    %806 = vmatpush2.msra.mxu0 0.0
    %807 = vmatprep.subr.mxu0 0.0
    %808 = vmatpush2.msra.mxu0 0.0
    %809 = vmatprep.subr.mxu0 0.0
    %810 = vmatpush2.msra.mxu0 0.0
    %811 = vmatprep.subr.mxu0 0.0
    %812 = vmatpush2.msra.mxu0 0.0
    %813 = vmatprep.subr.mxu0 0.0
    %814 = vmatpush2.msra.mxu0 0.0
    %815 = vmatprep.subr.mxu0 0.0
    %816 = vmatpush2.msra.mxu0 0.0
    %817 = vmatprep.subr.mxu0 0.0
    %818 = vmatpush2.msra.mxu0 0.0
    %819 = vmatprep.mubr.f32.mxu0 0.0
    %v820 = vand.u32 %v526, 4294901760
    %v821 = vsub.f32 %v526, %v820
    %v822 = vand.u32 %v821, 4294901760
    %823 = vmatmul.mubr.f32.gmra.mxu0 %v822
    %v824 = vpop.f32.mrf.mxu0
    %v825 = vadd.f32 %v751, %v824
    %v826 = vpop.f32.mrf.mxu0
    %827 = vdwg.mxu0
    %828 = vmatprep.subr.mxu0 0.0
    %829 = vmatpush1.msra.mxu0 0.0
    %830 = vmatprep.subr.mxu0 0.0
    %831 = vmatpush1.msra.mxu0 0.0
    %832 = vmatprep.subr.mxu0 0.0
    %833 = vmatpush1.msra.mxu0 0.0
    %834 = vmatprep.subr.mxu0 0.0
    %835 = vmatpush1.msra.mxu0 0.0
    %836 = vmatprep.subr.mxu0 0.0
    %837 = vmatpush1.msra.mxu0 0.0
    %838 = vmatprep.subr.mxu0 0.0
    %839 = vmatpush1.msra.mxu0 0.0
    %840 = vmatprep.subr.mxu0 0.0
    %841 = vmatpush1.msra.mxu0 0.0
    %842 = vmatprep.subr.mxu0 0.0
    %843 = vmatpush1.msra.mxu0 0.0
    %844 = vmatprep.subr.mxu0 0.0
    %845 = vmatpush1.msra.mxu0 0.0
    %846 = vmatprep.subr.mxu0 0.0
    %847 = vmatpush1.msra.mxu0 0.0
    %848 = vmatprep.subr.mxu0 0.0
    %849 = vmatpush1.msra.mxu0 0.0
    %850 = vmatprep.subr.mxu0 0.0
    %851 = vmatpush1.msra.mxu0 0.0
    %852 = vmatprep.subr.mxu0 0.0
    %853 = vmatpush1.msra.mxu0 0.0
    %854 = vmatprep.subr.mxu0 0.0
    %855 = vmatpush1.msra.mxu0 0.0
    %856 = vmatprep.subr.mxu0 0.0
    %857 = vmatpush1.msra.mxu0 0.0
    %858 = vmatprep.subr.mxu0 0.0
    %v859 = vand.u32 %v523, 4294901760
    %v860 = vsub.f32 %v523, %v859
    %v861 = vand.u32 %v860, 4294901760
    %862 = vmatpush1.msra.mxu0 %v861
    %863 = vmatprep.subr.mxu0 0.0
    %864 = vmatpush2.msra.mxu0 0.0
    %865 = vmatprep.subr.mxu0 0.0
    %866 = vmatpush2.msra.mxu0 0.0
    %867 = vmatprep.subr.mxu0 0.0
    %868 = vmatpush2.msra.mxu0 0.0
    %869 = vmatprep.subr.mxu0 0.0
    %870 = vmatpush2.msra.mxu0 0.0
    %871 = vmatprep.subr.mxu0 0.0
    %872 = vmatpush2.msra.mxu0 0.0
    %873 = vmatprep.subr.mxu0 0.0
    %874 = vmatpush2.msra.mxu0 0.0
    %875 = vmatprep.subr.mxu0 0.0
    %876 = vmatpush2.msra.mxu0 0.0
    %877 = vmatprep.subr.mxu0 0.0
    %878 = vmatpush2.msra.mxu0 0.0
    %879 = vmatprep.subr.mxu0 0.0
    %880 = vmatpush2.msra.mxu0 0.0
    %881 = vmatprep.subr.mxu0 0.0
    %882 = vmatpush2.msra.mxu0 0.0
    %883 = vmatprep.subr.mxu0 0.0
    %884 = vmatpush2.msra.mxu0 0.0
    %885 = vmatprep.subr.mxu0 0.0
    %886 = vmatpush2.msra.mxu0 0.0
    %887 = vmatprep.subr.mxu0 0.0
    %888 = vmatpush2.msra.mxu0 0.0
    %889 = vmatprep.subr.mxu0 0.0
    %890 = vmatpush2.msra.mxu0 0.0
    %891 = vmatprep.subr.mxu0 0.0
    %892 = vmatpush2.msra.mxu0 0.0
    %893 = vmatprep.subr.mxu0 0.0
    %894 = vmatpush2.msra.mxu0 0.0
    %895 = vmatprep.mubr.f32.mxu0 0.0
    %v896 = vand.u32 %v526, 4294901760
    %897 = vmatmul.mubr.f32.gmra.mxu0 %v896
    %v898 = vpop.f32.mrf.mxu0
    %v899 = vadd.f32 %v825, %v898
    %v900 = vpop.f32.mrf.mxu0
    %901 = vdwg.mxu0
    %902 = vmatprep.subr.mxu0 0.0
    %903 = vmatpush1.msra.mxu0 0.0
    %904 = vmatprep.subr.mxu0 0.0
    %905 = vmatpush1.msra.mxu0 0.0
    %906 = vmatprep.subr.mxu0 0.0
    %907 = vmatpush1.msra.mxu0 0.0
    %908 = vmatprep.subr.mxu0 0.0
    %909 = vmatpush1.msra.mxu0 0.0
    %910 = vmatprep.subr.mxu0 0.0
    %911 = vmatpush1.msra.mxu0 0.0
    %912 = vmatprep.subr.mxu0 0.0
    %913 = vmatpush1.msra.mxu0 0.0
    %914 = vmatprep.subr.mxu0 0.0
    %915 = vmatpush1.msra.mxu0 0.0
    %916 = vmatprep.subr.mxu0 0.0
    %917 = vmatpush1.msra.mxu0 0.0
    %918 = vmatprep.subr.mxu0 0.0
    %919 = vmatpush1.msra.mxu0 0.0
    %920 = vmatprep.subr.mxu0 0.0
    %921 = vmatpush1.msra.mxu0 0.0
    %922 = vmatprep.subr.mxu0 0.0
    %923 = vmatpush1.msra.mxu0 0.0
    %924 = vmatprep.subr.mxu0 0.0
    %925 = vmatpush1.msra.mxu0 0.0
    %926 = vmatprep.subr.mxu0 0.0
    %927 = vmatpush1.msra.mxu0 0.0
    %928 = vmatprep.subr.mxu0 0.0
    %929 = vmatpush1.msra.mxu0 0.0
    %930 = vmatprep.subr.mxu0 0.0
    %931 = vmatpush1.msra.mxu0 0.0
    %932 = vmatprep.subr.mxu0 0.0
    %v933 = vand.u32 %v523, 4294901760
    %934 = vmatpush1.msra.mxu0 %v933
    %935 = vmatprep.subr.mxu0 0.0
    %936 = vmatpush2.msra.mxu0 0.0
    %937 = vmatprep.subr.mxu0 0.0
    %938 = vmatpush2.msra.mxu0 0.0
    %939 = vmatprep.subr.mxu0 0.0
    %940 = vmatpush2.msra.mxu0 0.0
    %941 = vmatprep.subr.mxu0 0.0
    %942 = vmatpush2.msra.mxu0 0.0
    %943 = vmatprep.subr.mxu0 0.0
    %944 = vmatpush2.msra.mxu0 0.0
    %945 = vmatprep.subr.mxu0 0.0
    %946 = vmatpush2.msra.mxu0 0.0
    %947 = vmatprep.subr.mxu0 0.0
    %948 = vmatpush2.msra.mxu0 0.0
    %949 = vmatprep.subr.mxu0 0.0
    %950 = vmatpush2.msra.mxu0 0.0
    %951 = vmatprep.subr.mxu0 0.0
    %952 = vmatpush2.msra.mxu0 0.0
    %953 = vmatprep.subr.mxu0 0.0
    %954 = vmatpush2.msra.mxu0 0.0
    %955 = vmatprep.subr.mxu0 0.0
    %956 = vmatpush2.msra.mxu0 0.0
    %957 = vmatprep.subr.mxu0 0.0
    %958 = vmatpush2.msra.mxu0 0.0
    %959 = vmatprep.subr.mxu0 0.0
    %960 = vmatpush2.msra.mxu0 0.0
    %961 = vmatprep.subr.mxu0 0.0
    %962 = vmatpush2.msra.mxu0 0.0
    %963 = vmatprep.subr.mxu0 0.0
    %964 = vmatpush2.msra.mxu0 0.0
    %965 = vmatprep.subr.mxu0 0.0
    %966 = vmatpush2.msra.mxu0 0.0
    %967 = vmatprep.mubr.f32.mxu0 0.0
    %v968 = vand.u32 %v526, 4294901760
    %969 = vmatmul.mubr.f32.gmra.mxu0 %v968
    %v970 = vpop.f32.mrf.mxu0
    %v971 = vadd.f32 %v899, %v970
    %v972 = vpop.f32.mrf.mxu0
    %973 = vdwg.mxu0
    %974 = vst [vmem:[#allocation6] sm:$0xff] %v971
    // Predicated region
    $region22: #{tpu_custom_call.1} parent=1 // pred_check
      _
    $region23: #{tpu_custom_call.1} parent=1 // pred_check_branch
      %976 = sbr.rel (0) target = $region25
    $region24: #{tpu_custom_call.1} parent=1 // pred_region
      %s978 = ssub.s32 128, 128
      %979 = vsyncadd [#allocation4], %s978
      %s981 = sshll.u32 [#allocation5], 4
      %s982 = int_to_ptr.vmem [resolvable:$true] %s981
      %984 = dma.vmem_to_hbm [thread:$0]  %s982, 128, %s4, [#allocation4]
    $region25: #{tpu_custom_call.1} parent=1 // pred_fallthru
      _
    // Predicated region
    $region26: #{tpu_custom_call.1} parent=1 // pred_check
      _
    $region27: #{tpu_custom_call.1} parent=1 // pred_check_branch
      %986 = sbr.rel (0) target = $region29
    $region28: #{tpu_custom_call.1} parent=1 // pred_region
      %s988 = ssub.s32 128, 128
      %989 = vsyncadd [#allocation7], %s988
      %s991 = sshll.u32 [#allocation6], 4
      %s992 = int_to_ptr.vmem [resolvable:$true] %s991
      %994 = dma.vmem_to_hbm [thread:$0]  %s992, 128, %s5, [#allocation7]
    $region29: #{tpu_custom_call.1} parent=1 // pred_fallthru
      _
    // Predicated region
    $region30: #{tpu_custom_call.1} parent=1 // pred_check
      _
    $region31: #{tpu_custom_call.1} parent=1 // pred_check_branch
      %996 = sbr.rel (0) target = $region33
    $region32: #{tpu_custom_call.1} parent=1 // pred_region
      %997 = dma.done [#allocation4], 128
    $region33: #{tpu_custom_call.1} parent=1 // pred_fallthru
      _
    // Predicated region
    $region34: #{tpu_custom_call.1} parent=1 // pred_check
      _
    $region35: #{tpu_custom_call.1} parent=1 // pred_check_branch
      %999 = sbr.rel (0) target = $region37
    $region36: #{tpu_custom_call.1} parent=1 // pred_region
      %1000 = dma.done [#allocation7], 128
    $region37: #{tpu_custom_call.1} parent=1 // pred_fallthru
      _
    %1001 = vsyncpa [#allocation3], 1
    %1002 = vsyncpa [#allocation4], 1
    %1003 = vsyncpa [#allocation7], 1

// kernel: tpu_custom_call.1
$region0: #{tpu_custom_call.1}
  #allocation0 [shape = 'u32[]', space=smem, size = 0x4, offset = 0x4, fixed_abs, tag = 'smem constant byte address 0x4 - core index']
  #allocation1 [shape = 'u32[144,128]{1,0:T(1,128)}', space=vmem, size = 0x12000, scoped, tag = 'internal scratch']
  %s0 = inlined_call_operand.vmem [shape: s32[8,1], index: 0, kind: input, shape index: {}]
  %s1 = inlined_call_operand.vmem [shape: s32[8,1], index: 1, kind: input, shape index: {}]
  %s2 = inlined_call_operand.vmem [shape: f32[16,128], index: 2, kind: input, shape index: {}]
  %s3 = inlined_call_operand.hbm [shape: f32[8,128], index: 3, kind: input, shape index: {}]
  %s4 = inlined_call_operand.hbm [shape: f32[8,128], index: 4, kind: output, shape index: {0}]
  %s5 = inlined_call_operand.hbm [shape: f32[8,128], index: 5, kind: output, shape index: {1}]
  %6 = xla_tuple %s4, %s5
  %s7 = sld [smem:[#allocation0]]
  $region38: #{tpu_custom_call.1} parent=0
    _
  %s9 = ssub.s32 1, %s7
  %s10 = scalar_select 0, %s9, %s7
  $region1: #{tpu_custom_call.1} parent=0
    #allocation2 [shape = 'u8[4096]{0}', space=vmem, size = 0x1000, scoped, tag = 'input window, operand 3, single buffered']
    #allocation3 [shape = 's32[1]{0}', space=sflag, size = 0x4, scoped, tag = 'scoped memory for tpu_custom_call.1']
    #allocation4 [shape = 's32[1]{0}', space=sflag, size = 0x4, scoped, tag = 'scoped memory for tpu_custom_call.1']
    #allocation5 [shape = 'u8[4096]{0}', space=vmem, size = 0x1000, scoped, tag = 'output window, operand 0, single buffered']
    #allocation6 [shape = 'u8[4096]{0}', space=vmem, size = 0x1000, scoped, tag = 'output window, operand 1, single buffered']
    #allocation7 [shape = 's32[1]{0}', space=sflag, size = 0x4, scoped, tag = 'scoped memory for tpu_custom_call.1']
    %11 = vsyncpa [#allocation3], 0
    %12 = vsyncpa [#allocation4], 0
    %13 = vsyncpa [#allocation7], 0
    // Predicated region
    $region2: #{tpu_custom_call.1} parent=1 // pred_check
      _
    $region3: #{tpu_custom_call.1} parent=1 // pred_check_branch
      %15 = sbr.rel (0) target = $region5
    $region4: #{tpu_custom_call.1} parent=1 // pred_region
      _
    $region5: #{tpu_custom_call.1} parent=1 // pred_fallthru
      _
    // Predicated region
    $region6: #{tpu_custom_call.1} parent=1 // pred_check
      _
    $region7: #{tpu_custom_call.1} parent=1 // pred_check_branch
      %17 = sbr.rel (0) target = $region9
    $region8: #{tpu_custom_call.1} parent=1 // pred_region
      _
    $region9: #{tpu_custom_call.1} parent=1 // pred_fallthru
      _
    // Predicated region
    $region10: #{tpu_custom_call.1} parent=1 // pred_check
      _
    $region11: #{tpu_custom_call.1} parent=1 // pred_check_branch
      %19 = sbr.rel (0) target = $region13
    $region12: #{tpu_custom_call.1} parent=1 // pred_region
      _
    $region13: #{tpu_custom_call.1} parent=1 // pred_fallthru
      _
    // Predicated region
    $region14: #{tpu_custom_call.1} parent=1 // pred_check
      _
    $region15: #{tpu_custom_call.1} parent=1 // pred_check_branch
      %21 = sbr.rel (0) target = $region17
    $region16: #{tpu_custom_call.1} parent=1 // pred_region
      %s23 = ssub.s32 128, 128
      %24 = vsyncadd [#allocation3], %s23
      %s26 = sshll.u32 [#allocation2], 4
      %s27 = int_to_ptr.vmem [resolvable:$true] %s26
      %29 = dma.hbm_to_vmem [thread:$0]  %s3, 128, %s27, [#allocation3]
    $region17: #{tpu_custom_call.1} parent=1 // pred_fallthru
      _
    // Predicated region
    $region18: #{tpu_custom_call.1} parent=1 // pred_check
      _
    $region19: #{tpu_custom_call.1} parent=1 // pred_check_branch
      %31 = sbr.rel (0) target = $region21
    $region20: #{tpu_custom_call.1} parent=1 // pred_region
      %32 = dma.done [#allocation3], 128
    $region21: #{tpu_custom_call.1} parent=1 // pred_fallthru
      _
    %v33 = vld [vmem:[%s0] sm:$0xff]
    %vm34 = vcmp.gt.s32.totalorder %v33, 0
    %v35 = vsel %vm34, %v33, 0
    %vm36 = vcmp.lt.s32.totalorder %v35, 15
    %v37 = vsel %vm36, %v35, 15
    %v38 = vld [vmem:[%s1] sm:$0xff]
    %vm39 = vcmp.gt.s32.totalorder %v38, 0
    %v40 = vsel %vm39, %v38, 0
    %vm41 = vcmp.lt.s32.totalorder %v40, 7
    %v42 = vsel %vm41, %v40, 7
    %v43 = vlaneseq
    %v44 = vand.u32 %v43, 127
    %45 = vset.pattern.permute.xlu0 0
    %46 = vperm.xlu0 %45, %v37
    %v47 = vpop.permute.xlu0 %46
    %vm48 = vcmp.eq.s32.totalorder %v44, %v47
    %v49 = vsel %vm48, 1, 0
    %v50 = vcvt.s32.f32 %v49
    %v51 = vld [vmem:[%s2] sm:$0xff]
    %v52 = vld [vmem:[%s2 + $0x8] sm:$0xff]
    %vm53 = vcmask 130048
    %v55 = vsel %vm53, %v50, 0
    %57 = vmatprep.subr.mxu0 0.0
    %58 = vmatpush1.msra.mxu0 0.0
    %59 = vmatprep.subr.mxu0 0.0
    %60 = vmatpush1.msra.mxu0 0.0
    %61 = vmatprep.subr.mxu0 0.0
    %62 = vmatpush1.msra.mxu0 0.0
    %63 = vmatprep.subr.mxu0 0.0
    %64 = vmatpush1.msra.mxu0 0.0
    %65 = vmatprep.subr.mxu0 0.0
    %66 = vmatpush1.msra.mxu0 0.0
    %67 = vmatprep.subr.mxu0 0.0
    %68 = vmatpush1.msra.mxu0 0.0
    %69 = vmatprep.subr.mxu0 0.0
    %70 = vmatpush1.msra.mxu0 0.0
    %71 = vmatprep.subr.mxu0 0.0
    %72 = vmatpush1.msra.mxu0 0.0
    %73 = vmatprep.subr.mxu0 0.0
    %74 = vmatpush1.msra.mxu0 0.0
    %75 = vmatprep.subr.mxu0 0.0
    %76 = vmatpush1.msra.mxu0 0.0
    %77 = vmatprep.subr.mxu0 0.0
    %78 = vmatpush1.msra.mxu0 0.0
    %79 = vmatprep.subr.mxu0 0.0
    %80 = vmatpush1.msra.mxu0 0.0
    %81 = vmatprep.subr.mxu0 0.0
    %82 = vmatpush1.msra.mxu0 0.0
    %83 = vmatprep.subr.mxu0 0.0
    %84 = vmatpush1.msra.mxu0 0.0
    %85 = vmatprep.subr.mxu0 0.0
    %v86 = vand.u32 %v52, 4294901760
    %87 = vmatpush1.msra.mxu0 %v86
    %88 = vmatprep.subr.mxu0 0.0
    %v89 = vand.u32 %v51, 4294901760
    %90 = vmatpush1.msra.mxu0 %v89
    %91 = vmatprep.subr.mxu0 0.0
    %92 = vmatpush2.msra.mxu0 0.0
    %93 = vmatprep.subr.mxu0 0.0
    %94 = vmatpush2.msra.mxu0 0.0
    %95 = vmatprep.subr.mxu0 0.0
    %96 = vmatpush2.msra.mxu0 0.0
    %97 = vmatprep.subr.mxu0 0.0
    %98 = vmatpush2.msra.mxu0 0.0
    %99 = vmatprep.subr.mxu0 0.0
    %100 = vmatpush2.msra.mxu0 0.0
    %101 = vmatprep.subr.mxu0 0.0
    %102 = vmatpush2.msra.mxu0 0.0
    %103 = vmatprep.subr.mxu0 0.0
    %104 = vmatpush2.msra.mxu0 0.0
    %105 = vmatprep.subr.mxu0 0.0
    %106 = vmatpush2.msra.mxu0 0.0
    %107 = vmatprep.subr.mxu0 0.0
    %108 = vmatpush2.msra.mxu0 0.0
    %109 = vmatprep.subr.mxu0 0.0
    %110 = vmatpush2.msra.mxu0 0.0
    %111 = vmatprep.subr.mxu0 0.0
    %112 = vmatpush2.msra.mxu0 0.0
    %113 = vmatprep.subr.mxu0 0.0
    %114 = vmatpush2.msra.mxu0 0.0
    %115 = vmatprep.subr.mxu0 0.0
    %116 = vmatpush2.msra.mxu0 0.0
    %117 = vmatprep.subr.mxu0 0.0
    %118 = vmatpush2.msra.mxu0 0.0
    %119 = vmatprep.subr.mxu0 0.0
    %120 = vmatpush2.msra.mxu0 0.0
    %121 = vmatprep.subr.mxu0 0.0
    %122 = vmatpush2.msra.mxu0 0.0
    %123 = vmatprep.mubr.f32.mxu0 0.0
    %v124 = vand.u32 %v55, 4294901760
    %v125 = vsub.f32 %v55, %v124
    %v126 = vand.u32 %v125, 4294901760
    %v127 = vsub.f32 %v125, %v126
    %v128 = vand.u32 %v127, 4294901760
    %129 = vmatmul.mubr.f32.gmra.mxu0 %v128
    %v130 = vpop.f32.mrf.mxu0
    %v131 = vadd.f32 0.0, %v130
    %v132 = vpop.f32.mrf.mxu0
    %133 = vdwg.mxu0
    %134 = vmatprep.subr.mxu0 0.0
    %135 = vmatpush1.msra.mxu0 0.0
    %136 = vmatprep.subr.mxu0 0.0
    %137 = vmatpush1.msra.mxu0 0.0
    %138 = vmatprep.subr.mxu0 0.0
    %139 = vmatpush1.msra.mxu0 0.0
    %140 = vmatprep.subr.mxu0 0.0
    %141 = vmatpush1.msra.mxu0 0.0
    %142 = vmatprep.subr.mxu0 0.0
    %143 = vmatpush1.msra.mxu0 0.0
    %144 = vmatprep.subr.mxu0 0.0
    %145 = vmatpush1.msra.mxu0 0.0
    %146 = vmatprep.subr.mxu0 0.0
    %147 = vmatpush1.msra.mxu0 0.0
    %148 = vmatprep.subr.mxu0 0.0
    %149 = vmatpush1.msra.mxu0 0.0
    %150 = vmatprep.subr.mxu0 0.0
    %151 = vmatpush1.msra.mxu0 0.0
    %152 = vmatprep.subr.mxu0 0.0
    %153 = vmatpush1.msra.mxu0 0.0
    %154 = vmatprep.subr.mxu0 0.0
    %155 = vmatpush1.msra.mxu0 0.0
    %156 = vmatprep.subr.mxu0 0.0
    %157 = vmatpush1.msra.mxu0 0.0
    %158 = vmatprep.subr.mxu0 0.0
    %159 = vmatpush1.msra.mxu0 0.0
    %160 = vmatprep.subr.mxu0 0.0
    %161 = vmatpush1.msra.mxu0 0.0
    %162 = vmatprep.subr.mxu0 0.0
    %v163 = vand.u32 %v52, 4294901760
    %v164 = vsub.f32 %v52, %v163
    %v165 = vand.u32 %v164, 4294901760
    %v166 = vsub.f32 %v164, %v165
    %v167 = vand.u32 %v166, 4294901760
    %168 = vmatpush1.msra.mxu0 %v167
    %169 = vmatprep.subr.mxu0 0.0
    %v170 = vand.u32 %v51, 4294901760
    %v171 = vsub.f32 %v51, %v170
    %v172 = vand.u32 %v171, 4294901760
    %v173 = vsub.f32 %v171, %v172
    %v174 = vand.u32 %v173, 4294901760
    %175 = vmatpush1.msra.mxu0 %v174
    %176 = vmatprep.subr.mxu0 0.0
    %177 = vmatpush2.msra.mxu0 0.0
    %178 = vmatprep.subr.mxu0 0.0
    %179 = vmatpush2.msra.mxu0 0.0
    %180 = vmatprep.subr.mxu0 0.0
    %181 = vmatpush2.msra.mxu0 0.0
    %182 = vmatprep.subr.mxu0 0.0
    %183 = vmatpush2.msra.mxu0 0.0
    %184 = vmatprep.subr.mxu0 0.0
    %185 = vmatpush2.msra.mxu0 0.0
    %186 = vmatprep.subr.mxu0 0.0
    %187 = vmatpush2.msra.mxu0 0.0
    %188 = vmatprep.subr.mxu0 0.0
    %189 = vmatpush2.msra.mxu0 0.0
    %190 = vmatprep.subr.mxu0 0.0
    %191 = vmatpush2.msra.mxu0 0.0
    %192 = vmatprep.subr.mxu0 0.0
    %193 = vmatpush2.msra.mxu0 0.0
    %194 = vmatprep.subr.mxu0 0.0
    %195 = vmatpush2.msra.mxu0 0.0
    %196 = vmatprep.subr.mxu0 0.0
    %197 = vmatpush2.msra.mxu0 0.0
    %198 = vmatprep.subr.mxu0 0.0
    %199 = vmatpush2.msra.mxu0 0.0
    %200 = vmatprep.subr.mxu0 0.0
    %201 = vmatpush2.msra.mxu0 0.0
    %202 = vmatprep.subr.mxu0 0.0
    %203 = vmatpush2.msra.mxu0 0.0
    %204 = vmatprep.subr.mxu0 0.0
    %205 = vmatpush2.msra.mxu0 0.0
    %206 = vmatprep.subr.mxu0 0.0
    %207 = vmatpush2.msra.mxu0 0.0
    %208 = vmatprep.mubr.f32.mxu0 0.0
    %v209 = vand.u32 %v55, 4294901760
    %210 = vmatmul.mubr.f32.gmra.mxu0 %v209
    %v211 = vpop.f32.mrf.mxu0
    %v212 = vadd.f32 %v131, %v211
    %v213 = vpop.f32.mrf.mxu0
    %214 = vdwg.mxu0
    %215 = vmatprep.subr.mxu0 0.0
    %216 = vmatpush1.msra.mxu0 0.0
    %217 = vmatprep.subr.mxu0 0.0
    %218 = vmatpush1.msra.mxu0 0.0
    %219 = vmatprep.subr.mxu0 0.0
    %220 = vmatpush1.msra.mxu0 0.0
    %221 = vmatprep.subr.mxu0 0.0
    %222 = vmatpush1.msra.mxu0 0.0
    %223 = vmatprep.subr.mxu0 0.0
    %224 = vmatpush1.msra.mxu0 0.0
    %225 = vmatprep.subr.mxu0 0.0
    %226 = vmatpush1.msra.mxu0 0.0
    %227 = vmatprep.subr.mxu0 0.0
    %228 = vmatpush1.msra.mxu0 0.0
    %229 = vmatprep.subr.mxu0 0.0
    %230 = vmatpush1.msra.mxu0 0.0
    %231 = vmatprep.subr.mxu0 0.0
    %232 = vmatpush1.msra.mxu0 0.0
    %233 = vmatprep.subr.mxu0 0.0
    %234 = vmatpush1.msra.mxu0 0.0
    %235 = vmatprep.subr.mxu0 0.0
    %236 = vmatpush1.msra.mxu0 0.0
    %237 = vmatprep.subr.mxu0 0.0
    %238 = vmatpush1.msra.mxu0 0.0
    %239 = vmatprep.subr.mxu0 0.0
    %240 = vmatpush1.msra.mxu0 0.0
    %241 = vmatprep.subr.mxu0 0.0
    %242 = vmatpush1.msra.mxu0 0.0
    %243 = vmatprep.subr.mxu0 0.0
    %v244 = vand.u32 %v52, 4294901760
    %v245 = vsub.f32 %v52, %v244
    %246 = vmatpush1.msra.mxu0 %v245
    %247 = vmatprep.subr.mxu0 0.0
    %v248 = vand.u32 %v51, 4294901760
    %v249 = vsub.f32 %v51, %v248
    %250 = vmatpush1.msra.mxu0 %v249
    %251 = vmatprep.subr.mxu0 0.0
    %252 = vmatpush2.msra.mxu0 0.0
    %253 = vmatprep.subr.mxu0 0.0
    %254 = vmatpush2.msra.mxu0 0.0
    %255 = vmatprep.subr.mxu0 0.0
    %256 = vmatpush2.msra.mxu0 0.0
    %257 = vmatprep.subr.mxu0 0.0
    %258 = vmatpush2.msra.mxu0 0.0
    %259 = vmatprep.subr.mxu0 0.0
    %260 = vmatpush2.msra.mxu0 0.0
    %261 = vmatprep.subr.mxu0 0.0
    %262 = vmatpush2.msra.mxu0 0.0
    %263 = vmatprep.subr.mxu0 0.0
    %264 = vmatpush2.msra.mxu0 0.0
    %265 = vmatprep.subr.mxu0 0.0
    %266 = vmatpush2.msra.mxu0 0.0
    %267 = vmatprep.subr.mxu0 0.0
    %268 = vmatpush2.msra.mxu0 0.0
    %269 = vmatprep.subr.mxu0 0.0
    %270 = vmatpush2.msra.mxu0 0.0
    %271 = vmatprep.subr.mxu0 0.0
    %272 = vmatpush2.msra.mxu0 0.0
    %273 = vmatprep.subr.mxu0 0.0
    %274 = vmatpush2.msra.mxu0 0.0
    %275 = vmatprep.subr.mxu0 0.0
    %276 = vmatpush2.msra.mxu0 0.0
    %277 = vmatprep.subr.mxu0 0.0
    %278 = vmatpush2.msra.mxu0 0.0
    %279 = vmatprep.subr.mxu0 0.0
    %280 = vmatpush2.msra.mxu0 0.0
    %281 = vmatprep.subr.mxu0 0.0
    %282 = vmatpush2.msra.mxu0 0.0
    %283 = vmatprep.mubr.f32.mxu0 0.0
    %v284 = vand.u32 %v55, 4294901760
    %v285 = vsub.f32 %v55, %v284
    %286 = vmatmul.mubr.f32.gmra.mxu0 %v285
    %v287 = vpop.f32.mrf.mxu0
    %v288 = vadd.f32 %v212, %v287
    %v289 = vpop.f32.mrf.mxu0
    %290 = vdwg.mxu0
    %291 = vmatprep.subr.mxu0 0.0
    %292 = vmatpush1.msra.mxu0 0.0
    %293 = vmatprep.subr.mxu0 0.0
    %294 = vmatpush1.msra.mxu0 0.0
    %295 = vmatprep.subr.mxu0 0.0
    %296 = vmatpush1.msra.mxu0 0.0
    %297 = vmatprep.subr.mxu0 0.0
    %298 = vmatpush1.msra.mxu0 0.0
    %299 = vmatprep.subr.mxu0 0.0
    %300 = vmatpush1.msra.mxu0 0.0
    %301 = vmatprep.subr.mxu0 0.0
    %302 = vmatpush1.msra.mxu0 0.0
    %303 = vmatprep.subr.mxu0 0.0
    %304 = vmatpush1.msra.mxu0 0.0
    %305 = vmatprep.subr.mxu0 0.0
    %306 = vmatpush1.msra.mxu0 0.0
    %307 = vmatprep.subr.mxu0 0.0
    %308 = vmatpush1.msra.mxu0 0.0
    %309 = vmatprep.subr.mxu0 0.0
    %310 = vmatpush1.msra.mxu0 0.0
    %311 = vmatprep.subr.mxu0 0.0
    %312 = vmatpush1.msra.mxu0 0.0
    %313 = vmatprep.subr.mxu0 0.0
    %314 = vmatpush1.msra.mxu0 0.0
    %315 = vmatprep.subr.mxu0 0.0
    %316 = vmatpush1.msra.mxu0 0.0
    %317 = vmatprep.subr.mxu0 0.0
    %318 = vmatpush1.msra.mxu0 0.0
    %319 = vmatprep.subr.mxu0 0.0
    %v320 = vand.u32 %v52, 4294901760
    %321 = vmatpush1.msra.mxu0 %v320
    %322 = vmatprep.subr.mxu0 0.0
    %v323 = vand.u32 %v51, 4294901760
    %324 = vmatpush1.msra.mxu0 %v323
    %325 = vmatprep.subr.mxu0 0.0
    %326 = vmatpush2.msra.mxu0 0.0
    %327 = vmatprep.subr.mxu0 0.0
    %328 = vmatpush2.msra.mxu0 0.0
    %329 = vmatprep.subr.mxu0 0.0
    %330 = vmatpush2.msra.mxu0 0.0
    %331 = vmatprep.subr.mxu0 0.0
    %332 = vmatpush2.msra.mxu0 0.0
    %333 = vmatprep.subr.mxu0 0.0
    %334 = vmatpush2.msra.mxu0 0.0
    %335 = vmatprep.subr.mxu0 0.0
    %336 = vmatpush2.msra.mxu0 0.0
    %337 = vmatprep.subr.mxu0 0.0
    %338 = vmatpush2.msra.mxu0 0.0
    %339 = vmatprep.subr.mxu0 0.0
    %340 = vmatpush2.msra.mxu0 0.0
    %341 = vmatprep.subr.mxu0 0.0
    %342 = vmatpush2.msra.mxu0 0.0
    %343 = vmatprep.subr.mxu0 0.0
    %344 = vmatpush2.msra.mxu0 0.0
    %345 = vmatprep.subr.mxu0 0.0
    %346 = vmatpush2.msra.mxu0 0.0
    %347 = vmatprep.subr.mxu0 0.0
    %348 = vmatpush2.msra.mxu0 0.0
    %349 = vmatprep.subr.mxu0 0.0
    %350 = vmatpush2.msra.mxu0 0.0
    %351 = vmatprep.subr.mxu0 0.0
    %352 = vmatpush2.msra.mxu0 0.0
    %353 = vmatprep.subr.mxu0 0.0
    %354 = vmatpush2.msra.mxu0 0.0
    %355 = vmatprep.subr.mxu0 0.0
    %356 = vmatpush2.msra.mxu0 0.0
    %357 = vmatprep.mubr.f32.mxu0 0.0
    %v358 = vand.u32 %v55, 4294901760
    %v359 = vsub.f32 %v55, %v358
    %v360 = vand.u32 %v359, 4294901760
    %361 = vmatmul.mubr.f32.gmra.mxu0 %v360
    %v362 = vpop.f32.mrf.mxu0
    %v363 = vadd.f32 %v288, %v362
    %v364 = vpop.f32.mrf.mxu0
    %365 = vdwg.mxu0
    %366 = vmatprep.subr.mxu0 0.0
    %367 = vmatpush1.msra.mxu0 0.0
    %368 = vmatprep.subr.mxu0 0.0
    %369 = vmatpush1.msra.mxu0 0.0
    %370 = vmatprep.subr.mxu0 0.0
    %371 = vmatpush1.msra.mxu0 0.0
    %372 = vmatprep.subr.mxu0 0.0
    %373 = vmatpush1.msra.mxu0 0.0
    %374 = vmatprep.subr.mxu0 0.0
    %375 = vmatpush1.msra.mxu0 0.0
    %376 = vmatprep.subr.mxu0 0.0
    %377 = vmatpush1.msra.mxu0 0.0
    %378 = vmatprep.subr.mxu0 0.0
    %379 = vmatpush1.msra.mxu0 0.0
    %380 = vmatprep.subr.mxu0 0.0
    %381 = vmatpush1.msra.mxu0 0.0
    %382 = vmatprep.subr.mxu0 0.0
    %383 = vmatpush1.msra.mxu0 0.0
    %384 = vmatprep.subr.mxu0 0.0
    %385 = vmatpush1.msra.mxu0 0.0
    %386 = vmatprep.subr.mxu0 0.0
    %387 = vmatpush1.msra.mxu0 0.0
    %388 = vmatprep.subr.mxu0 0.0
    %389 = vmatpush1.msra.mxu0 0.0
    %390 = vmatprep.subr.mxu0 0.0
    %391 = vmatpush1.msra.mxu0 0.0
    %392 = vmatprep.subr.mxu0 0.0
    %393 = vmatpush1.msra.mxu0 0.0
    %394 = vmatprep.subr.mxu0 0.0
    %v395 = vand.u32 %v52, 4294901760
    %v396 = vsub.f32 %v52, %v395
    %v397 = vand.u32 %v396, 4294901760
    %398 = vmatpush1.msra.mxu0 %v397
    %399 = vmatprep.subr.mxu0 0.0
    %v400 = vand.u32 %v51, 4294901760
    %v401 = vsub.f32 %v51, %v400
    %v402 = vand.u32 %v401, 4294901760
    %403 = vmatpush1.msra.mxu0 %v402
    %404 = vmatprep.subr.mxu0 0.0
    %405 = vmatpush2.msra.mxu0 0.0
    %406 = vmatprep.subr.mxu0 0.0
    %407 = vmatpush2.msra.mxu0 0.0
    %408 = vmatprep.subr.mxu0 0.0
    %409 = vmatpush2.msra.mxu0 0.0
    %410 = vmatprep.subr.mxu0 0.0
    %411 = vmatpush2.msra.mxu0 0.0
    %412 = vmatprep.subr.mxu0 0.0
    %413 = vmatpush2.msra.mxu0 0.0
    %414 = vmatprep.subr.mxu0 0.0
    %415 = vmatpush2.msra.mxu0 0.0
    %416 = vmatprep.subr.mxu0 0.0
    %417 = vmatpush2.msra.mxu0 0.0
    %418 = vmatprep.subr.mxu0 0.0
    %419 = vmatpush2.msra.mxu0 0.0
    %420 = vmatprep.subr.mxu0 0.0
    %421 = vmatpush2.msra.mxu0 0.0
    %422 = vmatprep.subr.mxu0 0.0
    %423 = vmatpush2.msra.mxu0 0.0
    %424 = vmatprep.subr.mxu0 0.0
    %425 = vmatpush2.msra.mxu0 0.0
    %426 = vmatprep.subr.mxu0 0.0
    %427 = vmatpush2.msra.mxu0 0.0
    %428 = vmatprep.subr.mxu0 0.0
    %429 = vmatpush2.msra.mxu0 0.0
    %430 = vmatprep.subr.mxu0 0.0
    %431 = vmatpush2.msra.mxu0 0.0
    %432 = vmatprep.subr.mxu0 0.0
    %433 = vmatpush2.msra.mxu0 0.0
    %434 = vmatprep.subr.mxu0 0.0
    %435 = vmatpush2.msra.mxu0 0.0
    %436 = vmatprep.mubr.f32.mxu0 0.0
    %v437 = vand.u32 %v55, 4294901760
    %438 = vmatmul.mubr.f32.gmra.mxu0 %v437
    %v439 = vpop.f32.mrf.mxu0
    %v440 = vadd.f32 %v363, %v439
    %v441 = vpop.f32.mrf.mxu0
    %442 = vdwg.mxu0
    %443 = vmatprep.subr.mxu0 0.0
    %444 = vmatpush1.msra.mxu0 0.0
    %445 = vmatprep.subr.mxu0 0.0
    %446 = vmatpush1.msra.mxu0 0.0
    %447 = vmatprep.subr.mxu0 0.0
    %448 = vmatpush1.msra.mxu0 0.0
    %449 = vmatprep.subr.mxu0 0.0
    %450 = vmatpush1.msra.mxu0 0.0
    %451 = vmatprep.subr.mxu0 0.0
    %452 = vmatpush1.msra.mxu0 0.0
    %453 = vmatprep.subr.mxu0 0.0
    %454 = vmatpush1.msra.mxu0 0.0
    %455 = vmatprep.subr.mxu0 0.0
    %456 = vmatpush1.msra.mxu0 0.0
    %457 = vmatprep.subr.mxu0 0.0
    %458 = vmatpush1.msra.mxu0 0.0
    %459 = vmatprep.subr.mxu0 0.0
    %460 = vmatpush1.msra.mxu0 0.0
    %461 = vmatprep.subr.mxu0 0.0
    %462 = vmatpush1.msra.mxu0 0.0
    %463 = vmatprep.subr.mxu0 0.0
    %464 = vmatpush1.msra.mxu0 0.0
    %465 = vmatprep.subr.mxu0 0.0
    %466 = vmatpush1.msra.mxu0 0.0
    %467 = vmatprep.subr.mxu0 0.0
    %468 = vmatpush1.msra.mxu0 0.0
    %469 = vmatprep.subr.mxu0 0.0
    %470 = vmatpush1.msra.mxu0 0.0
    %471 = vmatprep.subr.mxu0 0.0
    %v472 = vand.u32 %v52, 4294901760
    %473 = vmatpush1.msra.mxu0 %v472
    %474 = vmatprep.subr.mxu0 0.0
    %v475 = vand.u32 %v51, 4294901760
    %476 = vmatpush1.msra.mxu0 %v475
    %477 = vmatprep.subr.mxu0 0.0
    %478 = vmatpush2.msra.mxu0 0.0
    %479 = vmatprep.subr.mxu0 0.0
    %480 = vmatpush2.msra.mxu0 0.0
    %481 = vmatprep.subr.mxu0 0.0
    %482 = vmatpush2.msra.mxu0 0.0
    %483 = vmatprep.subr.mxu0 0.0
    %484 = vmatpush2.msra.mxu0 0.0
    %485 = vmatprep.subr.mxu0 0.0
    %486 = vmatpush2.msra.mxu0 0.0
    %487 = vmatprep.subr.mxu0 0.0
    %488 = vmatpush2.msra.mxu0 0.0
    %489 = vmatprep.subr.mxu0 0.0
    %490 = vmatpush2.msra.mxu0 0.0
    %491 = vmatprep.subr.mxu0 0.0
    %492 = vmatpush2.msra.mxu0 0.0
    %493 = vmatprep.subr.mxu0 0.0
    %494 = vmatpush2.msra.mxu0 0.0
    %495 = vmatprep.subr.mxu0 0.0
    %496 = vmatpush2.msra.mxu0 0.0
    %497 = vmatprep.subr.mxu0 0.0
    %498 = vmatpush2.msra.mxu0 0.0
    %499 = vmatprep.subr.mxu0 0.0
    %500 = vmatpush2.msra.mxu0 0.0
    %501 = vmatprep.subr.mxu0 0.0
    %502 = vmatpush2.msra.mxu0 0.0
    %503 = vmatprep.subr.mxu0 0.0
    %504 = vmatpush2.msra.mxu0 0.0
    %505 = vmatprep.subr.mxu0 0.0
    %506 = vmatpush2.msra.mxu0 0.0
    %507 = vmatprep.subr.mxu0 0.0
    %508 = vmatpush2.msra.mxu0 0.0
    %509 = vmatprep.mubr.f32.mxu0 0.0
    %v510 = vand.u32 %v55, 4294901760
    %511 = vmatmul.mubr.f32.gmra.mxu0 %v510
    %v512 = vpop.f32.mrf.mxu0
    %v513 = vadd.f32 %v440, %v512
    %v514 = vpop.f32.mrf.mxu0
    %515 = vdwg.mxu0
    %516 = vst [vmem:[#allocation5] sm:$0xff] %v513
    %517 = vset.pattern.permute.xlu0 0
    %518 = vperm.xlu0 %517, %v42
    %v519 = vpop.permute.xlu0 %518
    %vm520 = vcmp.eq.s32.totalorder %v44, %v519
    %v521 = vsel %vm520, 1, 0
    %v522 = vcvt.s32.f32 %v521
    %v523 = vld [vmem:[#allocation2] sm:$0xff]
    %vm524 = vcmask 64512
    %v526 = vsel %vm524, %v522, 0
    %528 = vmatprep.subr.mxu0 0.0
    %529 = vmatpush1.msra.mxu0 0.0
    %530 = vmatprep.subr.mxu0 0.0
    %531 = vmatpush1.msra.mxu0 0.0
    %532 = vmatprep.subr.mxu0 0.0
    %533 = vmatpush1.msra.mxu0 0.0
    %534 = vmatprep.subr.mxu0 0.0
    %535 = vmatpush1.msra.mxu0 0.0
    %536 = vmatprep.subr.mxu0 0.0
    %537 = vmatpush1.msra.mxu0 0.0
    %538 = vmatprep.subr.mxu0 0.0
    %539 = vmatpush1.msra.mxu0 0.0
    %540 = vmatprep.subr.mxu0 0.0
    %541 = vmatpush1.msra.mxu0 0.0
    %542 = vmatprep.subr.mxu0 0.0
    %543 = vmatpush1.msra.mxu0 0.0
    %544 = vmatprep.subr.mxu0 0.0
    %545 = vmatpush1.msra.mxu0 0.0
    %546 = vmatprep.subr.mxu0 0.0
    %547 = vmatpush1.msra.mxu0 0.0
    %548 = vmatprep.subr.mxu0 0.0
    %549 = vmatpush1.msra.mxu0 0.0
    %550 = vmatprep.subr.mxu0 0.0
    %551 = vmatpush1.msra.mxu0 0.0
    %552 = vmatprep.subr.mxu0 0.0
    %553 = vmatpush1.msra.mxu0 0.0
    %554 = vmatprep.subr.mxu0 0.0
    %555 = vmatpush1.msra.mxu0 0.0
    %556 = vmatprep.subr.mxu0 0.0
    %557 = vmatpush1.msra.mxu0 0.0
    %558 = vmatprep.subr.mxu0 0.0
    %v559 = vand.u32 %v523, 4294901760
    %560 = vmatpush1.msra.mxu0 %v559
    %561 = vmatprep.subr.mxu0 0.0
    %562 = vmatpush2.msra.mxu0 0.0
    %563 = vmatprep.subr.mxu0 0.0
    %564 = vmatpush2.msra.mxu0 0.0
    %565 = vmatprep.subr.mxu0 0.0
    %566 = vmatpush2.msra.mxu0 0.0
    %567 = vmatprep.subr.mxu0 0.0
    %568 = vmatpush2.msra.mxu0 0.0
    %569 = vmatprep.subr.mxu0 0.0
    %570 = vmatpush2.msra.mxu0 0.0
    %571 = vmatprep.subr.mxu0 0.0
    %572 = vmatpush2.msra.mxu0 0.0
    %573 = vmatprep.subr.mxu0 0.0
    %574 = vmatpush2.msra.mxu0 0.0
    %575 = vmatprep.subr.mxu0 0.0
    %576 = vmatpush2.msra.mxu0 0.0
    %577 = vmatprep.subr.mxu0 0.0
    %578 = vmatpush2.msra.mxu0 0.0
    %579 = vmatprep.subr.mxu0 0.0
    %580 = vmatpush2.msra.mxu0 0.0
    %581 = vmatprep.subr.mxu0 0.0
    %582 = vmatpush2.msra.mxu0 0.0
    %583 = vmatprep.subr.mxu0 0.0
    %584 = vmatpush2.msra.mxu0 0.0
    %585 = vmatprep.subr.mxu0 0.0
    %586 = vmatpush2.msra.mxu0 0.0
    %587 = vmatprep.subr.mxu0 0.0
    %588 = vmatpush2.msra.mxu0 0.0
    %589 = vmatprep.subr.mxu0 0.0
    %590 = vmatpush2.msra.mxu0 0.0
    %591 = vmatprep.subr.mxu0 0.0
    %592 = vmatpush2.msra.mxu0 0.0
    %593 = vmatprep.mubr.f32.mxu0 0.0
    %v594 = vand.u32 %v526, 4294901760
    %v595 = vsub.f32 %v526, %v594
    %v596 = vand.u32 %v595, 4294901760
    %v597 = vsub.f32 %v595, %v596
    %v598 = vand.u32 %v597, 4294901760
    %599 = vmatmul.mubr.f32.gmra.mxu0 %v598
    %v600 = vpop.f32.mrf.mxu0
    %v601 = vadd.f32 0.0, %v600
    %v602 = vpop.f32.mrf.mxu0
    %603 = vdwg.mxu0
    %604 = vmatprep.subr.mxu0 0.0
    %605 = vmatpush1.msra.mxu0 0.0
    %606 = vmatprep.subr.mxu0 0.0
    %607 = vmatpush1.msra.mxu0 0.0
    %608 = vmatprep.subr.mxu0 0.0
    %609 = vmatpush1.msra.mxu0 0.0
    %610 = vmatprep.subr.mxu0 0.0
    %611 = vmatpush1.msra.mxu0 0.0
    %612 = vmatprep.subr.mxu0 0.0
    %613 = vmatpush1.msra.mxu0 0.0
    %614 = vmatprep.subr.mxu0 0.0
    %615 = vmatpush1.msra.mxu0 0.0
    %616 = vmatprep.subr.mxu0 0.0
    %617 = vmatpush1.msra.mxu0 0.0
    %618 = vmatprep.subr.mxu0 0.0
    %619 = vmatpush1.msra.mxu0 0.0
    %620 = vmatprep.subr.mxu0 0.0
    %621 = vmatpush1.msra.mxu0 0.0
    %622 = vmatprep.subr.mxu0 0.0
    %623 = vmatpush1.msra.mxu0 0.0
    %624 = vmatprep.subr.mxu0 0.0
    %625 = vmatpush1.msra.mxu0 0.0
    %626 = vmatprep.subr.mxu0 0.0
    %627 = vmatpush1.msra.mxu0 0.0
    %628 = vmatprep.subr.mxu0 0.0
    %629 = vmatpush1.msra.mxu0 0.0
    %630 = vmatprep.subr.mxu0 0.0
    %631 = vmatpush1.msra.mxu0 0.0
    %632 = vmatprep.subr.mxu0 0.0
    %633 = vmatpush1.msra.mxu0 0.0
    %634 = vmatprep.subr.mxu0 0.0
    %v635 = vand.u32 %v523, 4294901760
    %v636 = vsub.f32 %v523, %v635
    %v637 = vand.u32 %v636, 4294901760
    %v638 = vsub.f32 %v636, %v637
    %v639 = vand.u32 %v638, 4294901760
    %640 = vmatpush1.msra.mxu0 %v639
    %641 = vmatprep.subr.mxu0 0.0
    %642 = vmatpush2.msra.mxu0 0.0
    %643 = vmatprep.subr.mxu0 0.0
    %644 = vmatpush2.msra.mxu0 0.0
    %645 = vmatprep.subr.mxu0 0.0
    %646 = vmatpush2.msra.mxu0 0.0
    %647 = vmatprep.subr.mxu0 0.0
    %648 = vmatpush2.msra.mxu0 0.0
    %649 = vmatprep.subr.mxu0 0.0
    %650 = vmatpush2.msra.mxu0 0.0
    %651 = vmatprep.subr.mxu0 0.0
    %652 = vmatpush2.msra.mxu0 0.0
    %653 = vmatprep.subr.mxu0 0.0
    %654 = vmatpush2.msra.mxu0 0.0
    %655 = vmatprep.subr.mxu0 0.0
    %656 = vmatpush2.msra.mxu0 0.0
    %657 = vmatprep.subr.mxu0 0.0
    %658 = vmatpush2.msra.mxu0 0.0
    %659 = vmatprep.subr.mxu0 0.0
    %660 = vmatpush2.msra.mxu0 0.0
    %661 = vmatprep.subr.mxu0 0.0
    %662 = vmatpush2.msra.mxu0 0.0
    %663 = vmatprep.subr.mxu0 0.0
    %664 = vmatpush2.msra.mxu0 0.0
    %665 = vmatprep.subr.mxu0 0.0
    %666 = vmatpush2.msra.mxu0 0.0
    %667 = vmatprep.subr.mxu0 0.0
    %668 = vmatpush2.msra.mxu0 0.0
    %669 = vmatprep.subr.mxu0 0.0
    %670 = vmatpush2.msra.mxu0 0.0
    %671 = vmatprep.subr.mxu0 0.0
    %672 = vmatpush2.msra.mxu0 0.0
    %673 = vmatprep.mubr.f32.mxu0 0.0
    %v674 = vand.u32 %v526, 4294901760
    %675 = vmatmul.mubr.f32.gmra.mxu0 %v674
    %v676 = vpop.f32.mrf.mxu0
    %v677 = vadd.f32 %v601, %v676
    %v678 = vpop.f32.mrf.mxu0
    %679 = vdwg.mxu0
    %680 = vmatprep.subr.mxu0 0.0
    %681 = vmatpush1.msra.mxu0 0.0
    %682 = vmatprep.subr.mxu0 0.0
    %683 = vmatpush1.msra.mxu0 0.0
    %684 = vmatprep.subr.mxu0 0.0
    %685 = vmatpush1.msra.mxu0 0.0
    %686 = vmatprep.subr.mxu0 0.0
    %687 = vmatpush1.msra.mxu0 0.0
    %688 = vmatprep.subr.mxu0 0.0
    %689 = vmatpush1.msra.mxu0 0.0
    %690 = vmatprep.subr.mxu0 0.0
    %691 = vmatpush1.msra.mxu0 0.0
    %692 = vmatprep.subr.mxu0 0.0
    %693 = vmatpush1.msra.mxu0 0.0
    %694 = vmatprep.subr.mxu0 0.0
    %695 = vmatpush1.msra.mxu0 0.0
    %696 = vmatprep.subr.mxu0 0.0
    %697 = vmatpush1.msra.mxu0 0.0
    %698 = vmatprep.subr.mxu0 0.0
    %699 = vmatpush1.msra.mxu0 0.0
    %700 = vmatprep.subr.mxu0 0.0
    %701 = vmatpush1.msra.mxu0 0.0
    %702 = vmatprep.subr.mxu0 0.0
    %703 = vmatpush1.msra.mxu0 0.0
    %704 = vmatprep.subr.mxu0 0.0
    %705 = vmatpush1.msra.mxu0 0.0
    %706 = vmatprep.subr.mxu0 0.0
    %707 = vmatpush1.msra.mxu0 0.0
    %708 = vmatprep.subr.mxu0 0.0
    %709 = vmatpush1.msra.mxu0 0.0
    %710 = vmatprep.subr.mxu0 0.0
    %v711 = vand.u32 %v523, 4294901760
    %v712 = vsub.f32 %v523, %v711
    %713 = vmatpush1.msra.mxu0 %v712
    %714 = vmatprep.subr.mxu0 0.0
    %715 = vmatpush2.msra.mxu0 0.0
    %716 = vmatprep.subr.mxu0 0.0
    %717 = vmatpush2.msra.mxu0 0.0
    %718 = vmatprep.subr.mxu0 0.0
    %719 = vmatpush2.msra.mxu0 0.0
    %720 = vmatprep.subr.mxu0 0.0
    %721 = vmatpush2.msra.mxu0 0.0
    %722 = vmatprep.subr.mxu0 0.0
    %723 = vmatpush2.msra.mxu0 0.0
    %724 = vmatprep.subr.mxu0 0.0
    %725 = vmatpush2.msra.mxu0 0.0
    %726 = vmatprep.subr.mxu0 0.0
    %727 = vmatpush2.msra.mxu0 0.0
    %728 = vmatprep.subr.mxu0 0.0
    %729 = vmatpush2.msra.mxu0 0.0
    %730 = vmatprep.subr.mxu0 0.0
    %731 = vmatpush2.msra.mxu0 0.0
    %732 = vmatprep.subr.mxu0 0.0
    %733 = vmatpush2.msra.mxu0 0.0
    %734 = vmatprep.subr.mxu0 0.0
    %735 = vmatpush2.msra.mxu0 0.0
    %736 = vmatprep.subr.mxu0 0.0
    %737 = vmatpush2.msra.mxu0 0.0
    %738 = vmatprep.subr.mxu0 0.0
    %739 = vmatpush2.msra.mxu0 0.0
    %740 = vmatprep.subr.mxu0 0.0
    %741 = vmatpush2.msra.mxu0 0.0
    %742 = vmatprep.subr.mxu0 0.0
    %743 = vmatpush2.msra.mxu0 0.0
    %744 = vmatprep.subr.mxu0 0.0
    %745 = vmatpush2.msra.mxu0 0.0
    %746 = vmatprep.mubr.f32.mxu0 0.0
    %v747 = vand.u32 %v526, 4294901760
    %v748 = vsub.f32 %v526, %v747
    %749 = vmatmul.mubr.f32.gmra.mxu0 %v748
    %v750 = vpop.f32.mrf.mxu0
    %v751 = vadd.f32 %v677, %v750
    %v752 = vpop.f32.mrf.mxu0
    %753 = vdwg.mxu0
    %754 = vmatprep.subr.mxu0 0.0
    %755 = vmatpush1.msra.mxu0 0.0
    %756 = vmatprep.subr.mxu0 0.0
    %757 = vmatpush1.msra.mxu0 0.0
    %758 = vmatprep.subr.mxu0 0.0
    %759 = vmatpush1.msra.mxu0 0.0
    %760 = vmatprep.subr.mxu0 0.0
    %761 = vmatpush1.msra.mxu0 0.0
    %762 = vmatprep.subr.mxu0 0.0
    %763 = vmatpush1.msra.mxu0 0.0
    %764 = vmatprep.subr.mxu0 0.0
    %765 = vmatpush1.msra.mxu0 0.0
    %766 = vmatprep.subr.mxu0 0.0
    %767 = vmatpush1.msra.mxu0 0.0
    %768 = vmatprep.subr.mxu0 0.0
    %769 = vmatpush1.msra.mxu0 0.0
    %770 = vmatprep.subr.mxu0 0.0
    %771 = vmatpush1.msra.mxu0 0.0
    %772 = vmatprep.subr.mxu0 0.0
    %773 = vmatpush1.msra.mxu0 0.0
    %774 = vmatprep.subr.mxu0 0.0
    %775 = vmatpush1.msra.mxu0 0.0
    %776 = vmatprep.subr.mxu0 0.0
    %777 = vmatpush1.msra.mxu0 0.0
    %778 = vmatprep.subr.mxu0 0.0
    %779 = vmatpush1.msra.mxu0 0.0
    %780 = vmatprep.subr.mxu0 0.0
    %781 = vmatpush1.msra.mxu0 0.0
    %782 = vmatprep.subr.mxu0 0.0
    %783 = vmatpush1.msra.mxu0 0.0
    %784 = vmatprep.subr.mxu0 0.0
    %v785 = vand.u32 %v523, 4294901760
    %786 = vmatpush1.msra.mxu0 %v785
    %787 = vmatprep.subr.mxu0 0.0
    %788 = vmatpush2.msra.mxu0 0.0
    %789 = vmatprep.subr.mxu0 0.0
    %790 = vmatpush2.msra.mxu0 0.0
    %791 = vmatprep.subr.mxu0 0.0
    %792 = vmatpush2.msra.mxu0 0.0
    %793 = vmatprep.subr.mxu0 0.0
    %794 = vmatpush2.msra.mxu0 0.0
    %795 = vmatprep.subr.mxu0 0.0
    %796 = vmatpush2.msra.mxu0 0.0
    %797 = vmatprep.subr.mxu0 0.0
    %798 = vmatpush2.msra.mxu0 0.0
    %799 = vmatprep.subr.mxu0 0.0
    %800 = vmatpush2.msra.mxu0 0.0
    %801 = vmatprep.subr.mxu0 0.0
    %802 = vmatpush2.msra.mxu0 0.0
    %803 = vmatprep.subr.mxu0 0.0
    %804 = vmatpush2.msra.mxu0 0.0
    %805 = vmatprep.subr.mxu0 0.0
    %806 = vmatpush2.msra.mxu0 0.0
    %807 = vmatprep.subr.mxu0 0.0
    %808 = vmatpush2.msra.mxu0 0.0
    %809 = vmatprep.subr.mxu0 0.0
    %810 = vmatpush2.msra.mxu0 0.0
    %811 = vmatprep.subr.mxu0 0.0
    %812 = vmatpush2.msra.mxu0 0.0
    %813 = vmatprep.subr.mxu0 0.0
    %814 = vmatpush2.msra.mxu0 0.0
    %815 = vmatprep.subr.mxu0 0.0
    %816 = vmatpush2.msra.mxu0 0.0
    %817 = vmatprep.subr.mxu0 0.0
    %818 = vmatpush2.msra.mxu0 0.0
    %819 = vmatprep.mubr.f32.mxu0 0.0
    %v820 = vand.u32 %v526, 4294901760
    %v821 = vsub.f32 %v526, %v820
    %v822 = vand.u32 %v821, 4294901760
    %823 = vmatmul.mubr.f32.gmra.mxu0 %v822
    %v824 = vpop.f32.mrf.mxu0
    %v825 = vadd.f32 %v751, %v824
    %v826 = vpop.f32.mrf.mxu0
    %827 = vdwg.mxu0
    %828 = vmatprep.subr.mxu0 0.0
    %829 = vmatpush1.msra.mxu0 0.0
    %830 = vmatprep.subr.mxu0 0.0
    %831 = vmatpush1.msra.mxu0 0.0
    %832 = vmatprep.subr.mxu0 0.0
    %833 = vmatpush1.msra.mxu0 0.0
    %834 = vmatprep.subr.mxu0 0.0
    %835 = vmatpush1.msra.mxu0 0.0
    %836 = vmatprep.subr.mxu0 0.0
    %837 = vmatpush1.msra.mxu0 0.0
    %838 = vmatprep.subr.mxu0 0.0
    %839 = vmatpush1.msra.mxu0 0.0
    %840 = vmatprep.subr.mxu0 0.0
    %841 = vmatpush1.msra.mxu0 0.0
    %842 = vmatprep.subr.mxu0 0.0
    %843 = vmatpush1.msra.mxu0 0.0
    %844 = vmatprep.subr.mxu0 0.0
    %845 = vmatpush1.msra.mxu0 0.0
    %846 = vmatprep.subr.mxu0 0.0
    %847 = vmatpush1.msra.mxu0 0.0
    %848 = vmatprep.subr.mxu0 0.0
    %849 = vmatpush1.msra.mxu0 0.0
    %850 = vmatprep.subr.mxu0 0.0
    %851 = vmatpush1.msra.mxu0 0.0
    %852 = vmatprep.subr.mxu0 0.0
    %853 = vmatpush1.msra.mxu0 0.0
    %854 = vmatprep.subr.mxu0 0.0
    %855 = vmatpush1.msra.mxu0 0.0
    %856 = vmatprep.subr.mxu0 0.0
    %857 = vmatpush1.msra.mxu0 0.0
    %858 = vmatprep.subr.mxu0 0.0
    %v859 = vand.u32 %v523, 4294901760
    %v860 = vsub.f32 %v523, %v859
    %v861 = vand.u32 %v860, 4294901760
    %862 = vmatpush1.msra.mxu0 %v861
    %863 = vmatprep.subr.mxu0 0.0
    %864 = vmatpush2.msra.mxu0 0.0
    %865 = vmatprep.subr.mxu0 0.0
    %866 = vmatpush2.msra.mxu0 0.0
    %867 = vmatprep.subr.mxu0 0.0
    %868 = vmatpush2.msra.mxu0 0.0
    %869 = vmatprep.subr.mxu0 0.0
    %870 = vmatpush2.msra.mxu0 0.0
    %871 = vmatprep.subr.mxu0 0.0
    %872 = vmatpush2.msra.mxu0 0.0
    %873 = vmatprep.subr.mxu0 0.0
    %874 = vmatpush2.msra.mxu0 0.0
    %875 = vmatprep.subr.mxu0 0.0
    %876 = vmatpush2.msra.mxu0 0.0
    %877 = vmatprep.subr.mxu0 0.0
    %878 = vmatpush2.msra.mxu0 0.0
    %879 = vmatprep.subr.mxu0 0.0
    %880 = vmatpush2.msra.mxu0 0.0
    %881 = vmatprep.subr.mxu0 0.0
    %882 = vmatpush2.msra.mxu0 0.0
    %883 = vmatprep.subr.mxu0 0.0
    %884 = vmatpush2.msra.mxu0 0.0
    %885 = vmatprep.subr.mxu0 0.0
    %886 = vmatpush2.msra.mxu0 0.0
    %887 = vmatprep.subr.mxu0 0.0
    %888 = vmatpush2.msra.mxu0 0.0
    %889 = vmatprep.subr.mxu0 0.0
    %890 = vmatpush2.msra.mxu0 0.0
    %891 = vmatprep.subr.mxu0 0.0
    %892 = vmatpush2.msra.mxu0 0.0
    %893 = vmatprep.subr.mxu0 0.0
    %894 = vmatpush2.msra.mxu0 0.0
    %895 = vmatprep.mubr.f32.mxu0 0.0
    %v896 = vand.u32 %v526, 4294901760
    %897 = vmatmul.mubr.f32.gmra.mxu0 %v896
    %v898 = vpop.f32.mrf.mxu0
    %v899 = vadd.f32 %v825, %v898
    %v900 = vpop.f32.mrf.mxu0
    %901 = vdwg.mxu0
    %902 = vmatprep.subr.mxu0 0.0
    %903 = vmatpush1.msra.mxu0 0.0
    %904 = vmatprep.subr.mxu0 0.0
    %905 = vmatpush1.msra.mxu0 0.0
    %906 = vmatprep.subr.mxu0 0.0
    %907 = vmatpush1.msra.mxu0 0.0
    %908 = vmatprep.subr.mxu0 0.0
    %909 = vmatpush1.msra.mxu0 0.0
    %910 = vmatprep.subr.mxu0 0.0
    %911 = vmatpush1.msra.mxu0 0.0
    %912 = vmatprep.subr.mxu0 0.0
    %913 = vmatpush1.msra.mxu0 0.0
    %914 = vmatprep.subr.mxu0 0.0
    %915 = vmatpush1.msra.mxu0 0.0
    %916 = vmatprep.subr.mxu0 0.0
    %917 = vmatpush1.msra.mxu0 0.0
    %918 = vmatprep.subr.mxu0 0.0
    %919 = vmatpush1.msra.mxu0 0.0
    %920 = vmatprep.subr.mxu0 0.0
    %921 = vmatpush1.msra.mxu0 0.0
    %922 = vmatprep.subr.mxu0 0.0
    %923 = vmatpush1.msra.mxu0 0.0
    %924 = vmatprep.subr.mxu0 0.0
    %925 = vmatpush1.msra.mxu0 0.0
    %926 = vmatprep.subr.mxu0 0.0
    %927 = vmatpush1.msra.mxu0 0.0
    %928 = vmatprep.subr.mxu0 0.0
    %929 = vmatpush1.msra.mxu0 0.0
    %930 = vmatprep.subr.mxu0 0.0
    %931 = vmatpush1.msra.mxu0 0.0
    %932 = vmatprep.subr.mxu0 0.0
    %v933 = vand.u32 %v523, 4294901760
    %934 = vmatpush1.msra.mxu0 %v933
    %935 = vmatprep.subr.mxu0 0.0
    %936 = vmatpush2.msra.mxu0 0.0
    %937 = vmatprep.subr.mxu0 0.0
    %938 = vmatpush2.msra.mxu0 0.0
    %939 = vmatprep.subr.mxu0 0.0
    %940 = vmatpush2.msra.mxu0 0.0
    %941 = vmatprep.subr.mxu0 0.0
    %942 = vmatpush2.msra.mxu0 0.0
    %943 = vmatprep.subr.mxu0 0.0
    %944 = vmatpush2.msra.mxu0 0.0
    %945 = vmatprep.subr.mxu0 0.0
    %946 = vmatpush2.msra.mxu0 0.0
    %947 = vmatprep.subr.mxu0 0.0
    %948 = vmatpush2.msra.mxu0 0.0
    %949 = vmatprep.subr.mxu0 0.0
    %950 = vmatpush2.msra.mxu0 0.0
    %951 = vmatprep.subr.mxu0 0.0
    %952 = vmatpush2.msra.mxu0 0.0
    %953 = vmatprep.subr.mxu0 0.0
    %954 = vmatpush2.msra.mxu0 0.0
    %955 = vmatprep.subr.mxu0 0.0
    %956 = vmatpush2.msra.mxu0 0.0
    %957 = vmatprep.subr.mxu0 0.0
    %958 = vmatpush2.msra.mxu0 0.0
    %959 = vmatprep.subr.mxu0 0.0
    %960 = vmatpush2.msra.mxu0 0.0
    %961 = vmatprep.subr.mxu0 0.0
    %962 = vmatpush2.msra.mxu0 0.0
    %963 = vmatprep.subr.mxu0 0.0
    %964 = vmatpush2.msra.mxu0 0.0
    %965 = vmatprep.subr.mxu0 0.0
    %966 = vmatpush2.msra.mxu0 0.0
    %967 = vmatprep.mubr.f32.mxu0 0.0
    %v968 = vand.u32 %v526, 4294901760
    %969 = vmatmul.mubr.f32.gmra.mxu0 %v968
    %v970 = vpop.f32.mrf.mxu0
    %v971 = vadd.f32 %v899, %v970
    %v972 = vpop.f32.mrf.mxu0
    %973 = vdwg.mxu0
    %974 = vst [vmem:[#allocation6] sm:$0xff] %v971
    // Predicated region
    $region22: #{tpu_custom_call.1} parent=1 // pred_check
      _
    $region23: #{tpu_custom_call.1} parent=1 // pred_check_branch
      %976 = sbr.rel (0) target = $region25
    $region24: #{tpu_custom_call.1} parent=1 // pred_region
      %s978 = ssub.s32 128, 128
      %979 = vsyncadd [#allocation4], %s978
      %s981 = sshll.u32 [#allocation5], 4
      %s982 = int_to_ptr.vmem [resolvable:$true] %s981
      %984 = dma.vmem_to_hbm [thread:$0]  %s982, 128, %s4, [#allocation4]
    $region25: #{tpu_custom_call.1} parent=1 // pred_fallthru
      _
    // Predicated region
    $region26: #{tpu_custom_call.1} parent=1 // pred_check
      _
    $region27: #{tpu_custom_call.1} parent=1 // pred_check_branch
      %986 = sbr.rel (0) target = $region29
    $region28: #{tpu_custom_call.1} parent=1 // pred_region
      %s988 = ssub.s32 128, 128
      %989 = vsyncadd [#allocation7], %s988
      %s991 = sshll.u32 [#allocation6], 4
      %s992 = int_to_ptr.vmem [resolvable:$true] %s991
      %994 = dma.vmem_to_hbm [thread:$0]  %s992, 128, %s5, [#allocation7]
    $region29: #{tpu_custom_call.1} parent=1 // pred_fallthru
      _
    // Predicated region
    $region30: #{tpu_custom_call.1} parent=1 // pred_check
      _
    $region31: #{tpu_custom_call.1} parent=1 // pred_check_branch
      %996 = sbr.rel (0) target = $region33
    $region32: #{tpu_custom_call.1} parent=1 // pred_region
      %997 = dma.done [#allocation4], 128
    $region33: #{tpu_custom_call.1} parent=1 // pred_fallthru
      _
    // Predicated region
    $region34: #{tpu_custom_call.1} parent=1 // pred_check
      _
    $region35: #{tpu_custom_call.1} parent=1 // pred_check_branch
      %999 = sbr.rel (0) target = $region37
    $region36: #{tpu_custom_call.1} parent=1 // pred_region
      %1000 = dma.done [#allocation7], 128
    $region37: #{tpu_custom_call.1} parent=1 // pred_fallthru
      _
    %1001 = vsyncpa [#allocation3], 1
    %1002 = vsyncpa [#allocation4], 1
    %1003 = vsyncpa [#allocation7], 1

</llo_original>
